<compile_context>
chip_gen: v7x
topology: tpu7x:2x2x1
jax: 0.10.0
libtpu: 0.0.40
codegen_flags: <defaults>
</compile_context>

<pallas_src>
import numpy as np
import jax
import jax.numpy as jnp
from jax.experimental import pallas as pl
from jax.experimental.pallas import tpu as pltpu


# ---------------------------------------------------------------------------
# DFT / shift matrices (host-side numpy; become constants at trace time)
# ---------------------------------------------------------------------------
def _dft_and_shift(n):
    k = np.arange(n)
    F = np.exp(-2j * np.pi * np.outer(k, k) / n)     # forward DFT matrix
    S = np.fft.fftshift(np.eye(n), axes=0)           # S @ v == fftshift(v)
    return F, S


def _projection_matrices(H, W, factor, Hop):
    """Stacked real/imag constants for the composed linear maps.

    forward : fft2(fftshift(x))             = FH @ x @ FWT
    inverse : fftshift(ifft2(Y))[::f, ::f]  = GH @ Y @ GWT   (decimation folded)
    GH is zero-padded to Hop rows so all in-kernel reshapes stay 8-aligned.
    """
    FH_, SH = _dft_and_shift(H)
    FW_, SW = _dft_and_shift(W)

    FH = FH_ @ SH                          # (H, H)   input fftshift folded in
    FWT = (FW_ @ SW).T                     # (W, W)

    GH_full = SH @ (np.conj(FH_) / H)      # (H, H)   output fftshift folded in
    GW_full = SW @ (np.conj(FW_) / W)      # (W, W)
    GH = GH_full[::factor, :]              # (Ho, H)  row decimation folded in
    GWT = GW_full[::factor, :].T           # (W, Wo)  col decimation folded in

    GH_pad = np.zeros((Hop, H), dtype=complex)
    GH_pad[:GH.shape[0]] = GH              # zero rows: free on the MXU

    f32 = lambda a: jnp.asarray(np.ascontiguousarray(a), dtype=jnp.float32)
    fwt_s = f32(np.stack([FWT.real, FWT.imag]))            # (2, W, W)
    fht_s = f32(np.stack([FH.real.T, FH.imag.T]))          # (2, H, H)   FH^T
    ght_s = f32(np.stack([GH_pad.real.T, GH_pad.imag.T]))  # (2, H, Hop) GH^T
    gwt_s = f32(np.stack([GWT.real, GWT.imag]))            # (2, W, Wo)
    return fwt_s, fht_s, ght_s, gwt_s


# ---------------------------------------------------------------------------
# Pallas kernel: per block of TB images, all matmuls are 2-D with the batch
# folded into the M dimension; shared constants are never broadcast.
# ---------------------------------------------------------------------------
def _projection_kernel(x_ref, fwt_ref, fht_ref, ght_ref, gwt_ref, otf_ref,
                       o_ref):
    W = x_ref.shape[1]
    H = fht_ref.shape[1]
    TB = x_ref.shape[0] // H
    Hop = ght_ref.shape[2]

    def mm(a, b):                                    # 2-D MXU matmul
        return jnp.dot(a, b, preferred_element_type=jnp.float32)

    x = x_ref[...]                                   # (TB*H, W) real

    # ---- stage 1: A = x @ FWT  (x real) ------------------------------------
    ar = mm(x, fwt_ref[0])                           # (TB*H, W)
    ai = mm(x, fwt_ref[1])

    # per-image minor transpose so the row-side transforms become
    # right-multiplies while the batch stays folded into the M dimension
    def to_t(a):                                     # (TB*H, W) -> (TB*W, H)
        return jnp.transpose(a.reshape(TB, H, W), (0, 2, 1)).reshape(TB * W, H)

    art, ait = to_t(ar), to_t(ai)                    # A^T per image

    # ---- stage 2: X^T = A^T @ FH^T -----------------------------------------
    fhtr, fhti = fht_ref[0], fht_ref[1]
    xtr = mm(art, fhtr) - mm(ait, fhti)              # (TB*W, H)
    xti = mm(art, fhti) + mm(ait, fhtr)

    # ---- stage 3: Y^T = X^T (.) OTF^T   (OTF pre-tiled -> no broadcast) ----
    otr, oti = otf_ref[0], otf_ref[1]                # (TB*W, H)
    ytr = xtr * otr - xti * oti
    yti = xtr * oti + xti * otr

    # ---- stage 4: P^T = Y^T @ GH^T  (shift + row decimation folded in) -----
    ghtr, ghti = ght_ref[0], ght_ref[1]              # (H, Hop)
    ptr = mm(ytr, ghtr) - mm(yti, ghti)              # (TB*W, Hop)
    pti = mm(ytr, ghti) + mm(yti, ghtr)

    # transpose back: (TB*W, Hop) -> (TB*Hop, W)   (Hop is 8-aligned)
    def from_t(a):
        return jnp.transpose(a.reshape(TB, W, Hop), (0, 2, 1)).reshape(TB * Hop, W)

    pr, pi = from_t(ptr), from_t(pti)                # (TB*Hop, W)

    # ---- stage 5: out = Re(P @ GWT)  (col decimation; only real part built)
    o_ref[...] = mm(pr, gwt_ref[0]) - mm(pi, gwt_ref[1])   # (TB*Hop, Wo)


# ---------------------------------------------------------------------------
# tb selection: budget ALL live VMEM, keep >= 2 grid steps (v7x megacore)
# ---------------------------------------------------------------------------
def _choose_tb(B, H, W, Hop, Wo, budget_bytes=24 * 1024 * 1024):
    def rnd(n, m):
        return -(-n // m) * m

    def tile(r, c):                                  # padded f32 VMEM footprint
        return rnd(r, 8) * rnd(c, 128) * 4

    def est(tb):
        x_blk = 2 * tile(tb * H, W)                  # double-buffered input block
        otf_in = 2 * tile(2 * tb * W, H)             # pre-tiled OTF input
        out_blk = 2 * tile(tb * Hop, Wo)             # output block
        consts = 2 * (tile(2 * W, W) + tile(2 * H, H)
                      + tile(2 * H, Hop) + tile(2 * W, Wo))
        live = 12 * tile(tb * W, H)                  # in-kernel intermediates
        return x_blk + otf_in + out_blk + consts + live

    tb = 1
    for d in range(1, B + 1):
        if B % d != 0:
            continue
        if d == B and B > 1:     # keep >= 2 parallel grid steps (both v7x TCs)
            continue
        if est(d) <= budget_bytes:
            tb = d
    return tb


# ---------------------------------------------------------------------------
# Wrapper
# ---------------------------------------------------------------------------
def projection(sr, psf, factor):
    """Pallas implementation of Projection(factor).forward(sr, psf)."""
    N, C, H, W = sr.shape
    B = N * C
    Ho = len(range(0, H, factor))
    Wo = len(range(0, W, factor))
    Hop = -(-Ho // 8) * 8                  # pad decimated rows to a sublane multiple

    x = sr.astype(jnp.float32).reshape(B * H, W)   # batch folded into rows

    # --- ZeroPad + OTF (one small PSF FFT, shared by every image) ------------
    # TODO(synk): ZeroPad() is not defined in the reference code; the usual
    # convention (psf zero-padded to HxW with its centre at (H//2, W//2), so the
    # subsequent fftshift moves it to the origin) is assumed here.
    # TODO(synk): torch.fft.fftshift with default dim=None also rolls the N/C
    # axes; the two shifts cancel along those axes for even N and C (as here),
    # so only the spatial shifts are reproduced.
    kh, kw = psf.shape
    top, left = H // 2 - kh // 2, W // 2 - kw // 2
    pad_psf = jnp.zeros((H, W), jnp.float32).at[top:top + kh,
                                                left:left + kw].set(
        psf.astype(jnp.float32))
    otf = jnp.fft.fft2(jnp.fft.fftshift(pad_psf))
    otr = jnp.real(otf).astype(jnp.float32).T      # (W, H), transposed layout
    oti = jnp.imag(otf).astype(jnp.float32).T

    fwt_s, fht_s, ght_s, gwt_s = _projection_matrices(H, W, factor, Hop)

    tb = _choose_tb(B, H, W, Hop, Wo)
    grid = (B // tb,)

    # OTF pre-tiled over the tb images of one block (transposed orientation),
    # computed once here so the kernel never broadcasts a constant over batch.
    otf_s = jnp.stack([jnp.tile(otr, (tb, 1)),
                       jnp.tile(oti, (tb, 1))])    # (2, tb*W, H)

    def const(shape):
        return pl.BlockSpec(shape, lambda i: (0,) * len(shape))

    out = pl.pallas_call(
        _projection_kernel,
        out_shape=jax.ShapeDtypeStruct((B * Hop, Wo), jnp.float32),
        grid=grid,
        in_specs=[
            pl.BlockSpec((tb * H, W), lambda i: (i, 0)),   # image block
            const((2, W, W)),                              # FWT   re/im
            const((2, H, H)),                              # FH^T  re/im
            const((2, H, Hop)),                            # GH^T  re/im (+pad)
            const((2, W, Wo)),                             # GWT   re/im
            const((2, tb * W, H)),                         # OTF^T pre-tiled
        ],
        out_specs=pl.BlockSpec((tb * Hop, Wo), lambda i: (i, 0)),
        compiler_params=pltpu.CompilerParams(
            dimension_semantics=("parallel",),             # megacore-safe
            vmem_limit_bytes=32 * 1024 * 1024),
    )(x, fwt_s, fht_s, ght_s, gwt_s, otf_s)

    out = out.reshape(B, Hop, Wo)[:, :Ho, :]               # strip row padding
    return out.reshape(N, C, Ho, Wo)


# ---------------------------------------------------------------------------
# Pure-JAX reference (mirrors the PyTorch forward) for a correctness check
# ---------------------------------------------------------------------------
def _ref_projection(sr, psf, factor):
    N, C, H, W = sr.shape
    kh, kw = psf.shape
    top, left = H // 2 - kh // 2, W // 2 - kw // 2
    pad_psf = jnp.zeros((H, W), jnp.float32).at[top:top + kh,
                                                left:left + kw].set(
        psf.astype(jnp.float32))
    sr_fft = jnp.fft.fft2(jnp.fft.fftshift(sr.astype(jnp.float32),
                                           axes=(-2, -1)))
    otf = jnp.fft.fft2(jnp.fft.fftshift(pad_psf))
    out = jnp.fft.fftshift(jnp.fft.ifft2(sr_fft * otf), axes=(-2, -1))
    return jnp.real(out)[:, :, ::factor, ::factor]


if __name__ == "__main__":
    key = jax.random.PRNGKey(0)
    k1, k2 = jax.random.split(key)
    sr = jax.random.normal(k1, (2, 4, 16, 16), dtype=jnp.float32)
    psf = jax.random.uniform(k2, (5, 5), dtype=jnp.float32)
    psf = psf / jnp.sum(psf)
    factor = 4

    out = projection(sr, psf, factor)
    jax.block_until_ready(out)

    ref = _ref_projection(sr, psf, factor)
    assert out.shape == ref.shape == (2, 4, 4, 4), (out.shape, ref.shape)
    err = float(jnp.max(jnp.abs(out - ref)))
    assert jnp.allclose(out, ref, rtol=1e-3, atol=1e-3), err

    print("KERNEL_OK")
</pallas_src>

<mosaic_0001>
module attributes {stable_mosaic.version = 11 : i64} {
  func.func @_projection_kernel(%arg0: i32, %arg1: memref<64x16xf32, #tpu.memory_space<vmem>>, %arg2: memref<2x16x16xf32, #tpu.memory_space<vmem>>, %arg3: memref<2x16x16xf32, #tpu.memory_space<vmem>>, %arg4: memref<2x16x8xf32, #tpu.memory_space<vmem>>, %arg5: memref<2x16x4xf32, #tpu.memory_space<vmem>>, %arg6: memref<2x64x16xf32, #tpu.memory_space<vmem>>, %arg7: memref<32x4xf32, #tpu.memory_space<vmem>>) attributes {dimension_semantics = [#tpu.dimension_semantics<parallel>], iteration_bounds = array<i64: 2>, scalar_prefetch = 0 : i64, scratch_operands = 0 : i64, tpu.core_type = #tpu.core_type<tc>, window_params = [{transform_indices = @transform_0, window_bounds = array<i64: 64, 16>}, {pipeline_mode = #tpu.pipeline_mode<synchronous>, transform_indices = @transform_1, window_bounds = array<i64: 2, 16, 16>}, {pipeline_mode = #tpu.pipeline_mode<synchronous>, transform_indices = @transform_2, window_bounds = array<i64: 2, 16, 16>}, {pipeline_mode = #tpu.pipeline_mode<synchronous>, transform_indices = @transform_3, window_bounds = array<i64: 2, 16, 8>}, {pipeline_mode = #tpu.pipeline_mode<synchronous>, transform_indices = @transform_4, window_bounds = array<i64: 2, 16, 4>}, {pipeline_mode = #tpu.pipeline_mode<synchronous>, transform_indices = @transform_5, window_bounds = array<i64: 2, 64, 16>}, {transform_indices = @transform_6, window_bounds = array<i64: 32, 4>}]} {
    %c0 = arith.constant 0 : index
    %c0_0 = arith.constant 0 : index
    %0 = vector.load %arg1[%c0, %c0_0] : memref<64x16xf32, #tpu.memory_space<vmem>>, vector<64x16xf32>
    %c0_1 = arith.constant 0 : index
    %c0_2 = arith.constant 0 : index
    %c0_3 = arith.constant 0 : index
    %1 = vector.load %arg2[%c0_1, %c0_2, %c0_3] : memref<2x16x16xf32, #tpu.memory_space<vmem>>, vector<1x16x16xf32>
    %2 = vector.shape_cast %1 : vector<1x16x16xf32> to vector<16x16xf32>
    %cst = arith.constant dense<0.000000e+00> : vector<64x16xf32>
    %3 = tpu.matmul %0, %2, %cst {dimension_numbers = #tpu.dot_dimension_numbers<[1], [0], [0], [1], [0, 0, 1, 1], [], []>} : vector<64x16xf32>, vector<16x16xf32>, vector<64x16xf32> -> vector<64x16xf32>
    %c1 = arith.constant 1 : index
    %c0_4 = arith.constant 0 : index
    %c0_5 = arith.constant 0 : index
    %4 = vector.load %arg2[%c1, %c0_4, %c0_5] : memref<2x16x16xf32, #tpu.memory_space<vmem>>, vector<1x16x16xf32>
    %5 = vector.shape_cast %4 : vector<1x16x16xf32> to vector<16x16xf32>
    %cst_6 = arith.constant dense<0.000000e+00> : vector<64x16xf32>
    %6 = tpu.matmul %0, %5, %cst_6 {dimension_numbers = #tpu.dot_dimension_numbers<[1], [0], [0], [1], [0, 0, 1, 1], [], []>} : vector<64x16xf32>, vector<16x16xf32>, vector<64x16xf32> -> vector<64x16xf32>
    %7 = vector.shape_cast %3 : vector<64x16xf32> to vector<4x16x16xf32>
    %8 = tpu.transpose %7, [0, 2, 1] : vector<4x16x16xf32> -> vector<4x16x16xf32>
    %9 = vector.shape_cast %8 : vector<4x16x16xf32> to vector<64x16xf32>
    %10 = vector.shape_cast %6 : vector<64x16xf32> to vector<4x16x16xf32>
    %11 = tpu.transpose %10, [0, 2, 1] : vector<4x16x16xf32> -> vector<4x16x16xf32>
    %12 = vector.shape_cast %11 : vector<4x16x16xf32> to vector<64x16xf32>
    %c0_7 = arith.constant 0 : index
    %c0_8 = arith.constant 0 : index
    %c0_9 = arith.constant 0 : index
    %13 = vector.load %arg3[%c0_7, %c0_8, %c0_9] : memref<2x16x16xf32, #tpu.memory_space<vmem>>, vector<1x16x16xf32>
    %14 = vector.shape_cast %13 : vector<1x16x16xf32> to vector<16x16xf32>
    %c1_10 = arith.constant 1 : index
    %c0_11 = arith.constant 0 : index
    %c0_12 = arith.constant 0 : index
    %15 = vector.load %arg3[%c1_10, %c0_11, %c0_12] : memref<2x16x16xf32, #tpu.memory_space<vmem>>, vector<1x16x16xf32>
    %16 = vector.shape_cast %15 : vector<1x16x16xf32> to vector<16x16xf32>
    %cst_13 = arith.constant dense<0.000000e+00> : vector<64x16xf32>
    %17 = tpu.matmul %9, %14, %cst_13 {dimension_numbers = #tpu.dot_dimension_numbers<[1], [0], [0], [1], [0, 0, 1, 1], [], []>} : vector<64x16xf32>, vector<16x16xf32>, vector<64x16xf32> -> vector<64x16xf32>
    %cst_14 = arith.constant dense<0.000000e+00> : vector<64x16xf32>
    %18 = tpu.matmul %12, %16, %cst_14 {dimension_numbers = #tpu.dot_dimension_numbers<[1], [0], [0], [1], [0, 0, 1, 1], [], []>} : vector<64x16xf32>, vector<16x16xf32>, vector<64x16xf32> -> vector<64x16xf32>
    %19 = arith.subf %17, %18 : vector<64x16xf32>
    %cst_15 = arith.constant dense<0.000000e+00> : vector<64x16xf32>
    %20 = tpu.matmul %9, %16, %cst_15 {dimension_numbers = #tpu.dot_dimension_numbers<[1], [0], [0], [1], [0, 0, 1, 1], [], []>} : vector<64x16xf32>, vector<16x16xf32>, vector<64x16xf32> -> vector<64x16xf32>
    %cst_16 = arith.constant dense<0.000000e+00> : vector<64x16xf32>
    %21 = tpu.matmul %12, %14, %cst_16 {dimension_numbers = #tpu.dot_dimension_numbers<[1], [0], [0], [1], [0, 0, 1, 1], [], []>} : vector<64x16xf32>, vector<16x16xf32>, vector<64x16xf32> -> vector<64x16xf32>
    %22 = arith.addf %20, %21 : vector<64x16xf32>
    %c0_17 = arith.constant 0 : index
    %c0_18 = arith.constant 0 : index
    %c0_19 = arith.constant 0 : index
    %23 = vector.load %arg6[%c0_17, %c0_18, %c0_19] : memref<2x64x16xf32, #tpu.memory_space<vmem>>, vector<1x64x16xf32>
    %24 = vector.shape_cast %23 : vector<1x64x16xf32> to vector<64x16xf32>
    %c1_20 = arith.constant 1 : index
    %c0_21 = arith.constant 0 : index
    %c0_22 = arith.constant 0 : index
    %25 = vector.load %arg6[%c1_20, %c0_21, %c0_22] : memref<2x64x16xf32, #tpu.memory_space<vmem>>, vector<1x64x16xf32>
    %26 = vector.shape_cast %25 : vector<1x64x16xf32> to vector<64x16xf32>
    %27 = arith.mulf %19, %24 : vector<64x16xf32>
    %28 = arith.mulf %22, %26 : vector<64x16xf32>
    %29 = arith.subf %27, %28 : vector<64x16xf32>
    %30 = arith.mulf %19, %26 : vector<64x16xf32>
    %31 = arith.mulf %22, %24 : vector<64x16xf32>
    %32 = arith.addf %30, %31 : vector<64x16xf32>
    %c0_23 = arith.constant 0 : index
    %c0_24 = arith.constant 0 : index
    %c0_25 = arith.constant 0 : index
    %33 = vector.load %arg4[%c0_23, %c0_24, %c0_25] : memref<2x16x8xf32, #tpu.memory_space<vmem>>, vector<1x16x8xf32>
    %34 = vector.shape_cast %33 : vector<1x16x8xf32> to vector<16x8xf32>
    %c1_26 = arith.constant 1 : index
    %c0_27 = arith.constant 0 : index
    %c0_28 = arith.constant 0 : index
    %35 = vector.load %arg4[%c1_26, %c0_27, %c0_28] : memref<2x16x8xf32, #tpu.memory_space<vmem>>, vector<1x16x8xf32>
    %36 = vector.shape_cast %35 : vector<1x16x8xf32> to vector<16x8xf32>
    %cst_29 = arith.constant dense<0.000000e+00> : vector<64x8xf32>
    %37 = tpu.matmul %29, %34, %cst_29 {dimension_numbers = #tpu.dot_dimension_numbers<[1], [0], [0], [1], [0, 0, 1, 1], [], []>} : vector<64x16xf32>, vector<16x8xf32>, vector<64x8xf32> -> vector<64x8xf32>
    %cst_30 = arith.constant dense<0.000000e+00> : vector<64x8xf32>
    %38 = tpu.matmul %32, %36, %cst_30 {dimension_numbers = #tpu.dot_dimension_numbers<[1], [0], [0], [1], [0, 0, 1, 1], [], []>} : vector<64x16xf32>, vector<16x8xf32>, vector<64x8xf32> -> vector<64x8xf32>
    %39 = arith.subf %37, %38 : vector<64x8xf32>
    %cst_31 = arith.constant dense<0.000000e+00> : vector<64x8xf32>
    %40 = tpu.matmul %29, %36, %cst_31 {dimension_numbers = #tpu.dot_dimension_numbers<[1], [0], [0], [1], [0, 0, 1, 1], [], []>} : vector<64x16xf32>, vector<16x8xf32>, vector<64x8xf32> -> vector<64x8xf32>
    %cst_32 = arith.constant dense<0.000000e+00> : vector<64x8xf32>
    %41 = tpu.matmul %32, %34, %cst_32 {dimension_numbers = #tpu.dot_dimension_numbers<[1], [0], [0], [1], [0, 0, 1, 1], [], []>} : vector<64x16xf32>, vector<16x8xf32>, vector<64x8xf32> -> vector<64x8xf32>
    %42 = arith.addf %40, %41 : vector<64x8xf32>
    %43 = vector.shape_cast %39 : vector<64x8xf32> to vector<4x16x8xf32>
    %44 = tpu.transpose %43, [0, 2, 1] : vector<4x16x8xf32> -> vector<4x8x16xf32>
    %45 = vector.shape_cast %44 : vector<4x8x16xf32> to vector<32x16xf32>
    %46 = vector.shape_cast %42 : vector<64x8xf32> to vector<4x16x8xf32>
    %47 = tpu.transpose %46, [0, 2, 1] : vector<4x16x8xf32> -> vector<4x8x16xf32>
    %48 = vector.shape_cast %47 : vector<4x8x16xf32> to vector<32x16xf32>
    %c0_33 = arith.constant 0 : index
    %c0_34 = arith.constant 0 : index
    %c0_35 = arith.constant 0 : index
    %49 = vector.load %arg5[%c0_33, %c0_34, %c0_35] : memref<2x16x4xf32, #tpu.memory_space<vmem>>, vector<1x16x4xf32>
    %50 = vector.shape_cast %49 : vector<1x16x4xf32> to vector<16x4xf32>
    %cst_36 = arith.constant dense<0.000000e+00> : vector<32x4xf32>
    %51 = tpu.matmul %45, %50, %cst_36 {dimension_numbers = #tpu.dot_dimension_numbers<[1], [0], [0], [1], [0, 0, 1, 1], [], []>} : vector<32x16xf32>, vector<16x4xf32>, vector<32x4xf32> -> vector<32x4xf32>
    %c1_37 = arith.constant 1 : index
    %c0_38 = arith.constant 0 : index
    %c0_39 = arith.constant 0 : index
    %52 = vector.load %arg5[%c1_37, %c0_38, %c0_39] : memref<2x16x4xf32, #tpu.memory_space<vmem>>, vector<1x16x4xf32>
    %53 = vector.shape_cast %52 : vector<1x16x4xf32> to vector<16x4xf32>
    %cst_40 = arith.constant dense<0.000000e+00> : vector<32x4xf32>
    %54 = tpu.matmul %48, %53, %cst_40 {dimension_numbers = #tpu.dot_dimension_numbers<[1], [0], [0], [1], [0, 0, 1, 1], [], []>} : vector<32x16xf32>, vector<16x4xf32>, vector<32x4xf32> -> vector<32x4xf32>
    %55 = arith.subf %51, %54 : vector<32x4xf32>
    %c0_41 = arith.constant 0 : index
    %c0_42 = arith.constant 0 : index
    %56 = vector.load %arg7[%c0_41, %c0_42] : memref<32x4xf32, #tpu.memory_space<vmem>>, vector<32x4xf32>
    tpu.vector_store %arg7[%c0_41, %c0_42], %55 {strides = array<i32>} : memref<32x4xf32, #tpu.memory_space<vmem>>, vector<32x4xf32>,
    return
  }
  func.func @transform_0(%arg0: i32) -> (i32, i32) {
    %c0_i32 = arith.constant 0 : i32
    %c0_i32_0 = arith.constant 0 : i32
    return %arg0, %c0_i32 : i32, i32
  }
  func.func @transform_1(%arg0: i32) -> (i32, i32, i32) {
    %c0_i32 = arith.constant 0 : i32
    %c0_i32_0 = arith.constant 0 : i32
    %c0_i32_1 = arith.constant 0 : i32
    %c0_i32_2 = arith.constant 0 : i32
    return %c0_i32, %c0_i32_0, %c0_i32_1 : i32, i32, i32
  }
  func.func @transform_2(%arg0: i32) -> (i32, i32, i32) {
    %c0_i32 = arith.constant 0 : i32
    %c0_i32_0 = arith.constant 0 : i32
    %c0_i32_1 = arith.constant 0 : i32
    %c0_i32_2 = arith.constant 0 : i32
    return %c0_i32, %c0_i32_0, %c0_i32_1 : i32, i32, i32
  }
  func.func @transform_3(%arg0: i32) -> (i32, i32, i32) {
    %c0_i32 = arith.constant 0 : i32
    %c0_i32_0 = arith.constant 0 : i32
    %c0_i32_1 = arith.constant 0 : i32
    %c0_i32_2 = arith.constant 0 : i32
    return %c0_i32, %c0_i32_0, %c0_i32_1 : i32, i32, i32
  }
  func.func @transform_4(%arg0: i32) -> (i32, i32, i32) {
    %c0_i32 = arith.constant 0 : i32
    %c0_i32_0 = arith.constant 0 : i32
    %c0_i32_1 = arith.constant 0 : i32
    %c0_i32_2 = arith.constant 0 : i32
    return %c0_i32, %c0_i32_0, %c0_i32_1 : i32, i32, i32
  }
  func.func @transform_5(%arg0: i32) -> (i32, i32, i32) {
    %c0_i32 = arith.constant 0 : i32
    %c0_i32_0 = arith.constant 0 : i32
    %c0_i32_1 = arith.constant 0 : i32
    %c0_i32_2 = arith.constant 0 : i32
    return %c0_i32, %c0_i32_0, %c0_i32_1 : i32, i32, i32
  }
  func.func @transform_6(%arg0: i32) -> (i32, i32) {
    %c0_i32 = arith.constant 0 : i32
    %c0_i32_0 = arith.constant 0 : i32
    return %arg0, %c0_i32 : i32, i32
  }
}

</mosaic_0001>

<llo_original>
// kernel: tpu_custom_call.1
$region0: #{tpu_custom_call.1}
  #allocation0 [shape = 'u32[]', space=smem, size = 0x4, offset = 0x4, fixed_abs, tag = 'smem constant byte address 0x4 - core index']
  #allocation1 [shape = 'u32[144,128]{1,0:T(1,128)}', space=vmem, size = 0x12000, scoped, tag = 'internal scratch']
  %s0 = inlined_call_operand.vmem [shape: f32[128,16], index: 0, kind: input, shape index: {}]
  %s1 = inlined_call_operand.vmem [shape: f32[2,16,16], index: 1, kind: input, shape index: {}]
  %s2 = inlined_call_operand.vmem [shape: f32[2,16,16], index: 2, kind: input, shape index: {}]
  %s3 = inlined_call_operand.vmem [shape: f32[2,16,8], index: 3, kind: input, shape index: {}]
  %s4 = inlined_call_operand.vmem [shape: f32[2,16,4], index: 4, kind: input, shape index: {}]
  %s5 = inlined_call_operand.vmem [shape: f32[2,64,16], index: 5, kind: input, shape index: {}]
  %s6 = inlined_call_operand.vmem [shape: f32[64,4], index: 6, kind: output, shape index: {}]
  %s7 = sld [smem:[#allocation0]]
  $region57: #{tpu_custom_call.1} parent=0
    _
  %s9 = ssub.s32 1, %s7
  %s10 = scalar_select 0, %s9, %s7
  loop: start=0, step=1, limit=4
  $region2: #{tpu_custom_call.1} parent=0 // loop_pre_header
    _
  $region3: #{tpu_custom_call.1} parent=0 // loop_header
    %s12 = sphi 0, %s16
    %p13 = scmp.ge.s32.totalorder %s12, 4
    %s22 = sphi 0, %s24
    %s25 = sphi 0, %s22
    %s26 = sphi 0, %s25
    %s42 = sphi 0, %s26
    %s46 = sphi 0, %s46
    %s48 = sphi 0, %s46
    %s49 = sphi 0, %s48
    %s63 = sphi 0, %s49
    %s67 = sphi 0, %s67
    %s69 = sphi 0, %s67
    %s70 = sphi 0, %s69
    %s84 = sphi 0, %s70
    %s88 = sphi 0, %s88
    %s90 = sphi 0, %s88
    %s91 = sphi 0, %s90
    %s105 = sphi 0, %s91
    %s109 = sphi 0, %s109
    %s111 = sphi 0, %s109
    %s112 = sphi 0, %s111
    %s126 = sphi 0, %s112
    %s130 = sphi 0, %s130
    %s132 = sphi 0, %s130
    %s133 = sphi 0, %s132
    %s147 = sphi 0, %s133
    %s153 = sphi 0, %s155
    %s156 = sphi 0, %s153
    %s157 = sphi 0, %s156
    %s173 = sphi 0, %s157
  $region4: #{tpu_custom_call.1} parent=0 // loop_header_branch
    %15 = sbr.rel (%p13) target = $region8
  $region5: #{tpu_custom_call.1} parent=0 // loop_body
    %s17 = ssub.s32 %s12, 1
    %s18 = ssub.s32 %s12, 2
    %s19 = sadd.s32 %s12, 1
    %s20 = ssub.s32 %s12, %s19
    %p21 = scmp.eq.s32.totalorder %s20, 0
    %s23 = sadd.s32 %s22, 1
    %s24 = scalar_select %p21, %s22, %s23
    %p27 = pneg %p21
    %p28 = scmp.eq.s32.totalorder %s12, 1
    %p29 = por %p27, %p28
    %p30 = scmp.ne.s32.totalorder %s22, %s25
    %p31 = scmp.eq.s32.totalorder %s12, 0
    %p32 = por %p30, %p31
    %p33 = scmp.ne.s32.totalorder %s22, %s25
    %p34 = scmp.eq.s32.totalorder %s17, 1
    %p35 = por %p33, %p34
    %p36 = scmp.ne.s32.totalorder %s25, %s26
    %p37 = scmp.eq.s32.totalorder %s17, 0
    %p38 = por %p36, %p37
    %p39 = scmp.ne.s32.totalorder %s25, %s26
    %p40 = scmp.eq.s32.totalorder %s18, 1
    %p41 = por %p39, %p40
    %p43 = scmp.ne.s32.totalorder %s26, %s42
    %p44 = scmp.eq.s32.totalorder %s18, 0
    %p45 = por %p43, %p44
    %s47 = sadd.s32 %s46, 1
    %p50 = scmp.eq.s32.totalorder %s12, 1
    %p51 = scmp.ne.s32.totalorder %s46, %s48
    %p52 = scmp.eq.s32.totalorder %s12, 0
    %p53 = por %p51, %p52
    %p54 = scmp.ne.s32.totalorder %s46, %s48
    %p55 = scmp.eq.s32.totalorder %s17, 1
    %p56 = por %p54, %p55
    %p57 = scmp.ne.s32.totalorder %s48, %s49
    %p58 = scmp.eq.s32.totalorder %s17, 0
    %p59 = por %p57, %p58
    %p60 = scmp.ne.s32.totalorder %s48, %s49
    %p61 = scmp.eq.s32.totalorder %s18, 1
    %p62 = por %p60, %p61
    %p64 = scmp.ne.s32.totalorder %s49, %s63
    %p65 = scmp.eq.s32.totalorder %s18, 0
    %p66 = por %p64, %p65
    %s68 = sadd.s32 %s67, 1
    %p71 = scmp.eq.s32.totalorder %s12, 1
    %p72 = scmp.ne.s32.totalorder %s67, %s69
    %p73 = scmp.eq.s32.totalorder %s12, 0
    %p74 = por %p72, %p73
    %p75 = scmp.ne.s32.totalorder %s67, %s69
    %p76 = scmp.eq.s32.totalorder %s17, 1
    %p77 = por %p75, %p76
    %p78 = scmp.ne.s32.totalorder %s69, %s70
    %p79 = scmp.eq.s32.totalorder %s17, 0
    %p80 = por %p78, %p79
    %p81 = scmp.ne.s32.totalorder %s69, %s70
    %p82 = scmp.eq.s32.totalorder %s18, 1
    %p83 = por %p81, %p82
    %p85 = scmp.ne.s32.totalorder %s70, %s84
    %p86 = scmp.eq.s32.totalorder %s18, 0
    %p87 = por %p85, %p86
    %s89 = sadd.s32 %s88, 1
    %p92 = scmp.eq.s32.totalorder %s12, 1
    %p93 = scmp.ne.s32.totalorder %s88, %s90
    %p94 = scmp.eq.s32.totalorder %s12, 0
    %p95 = por %p93, %p94
    %p96 = scmp.ne.s32.totalorder %s88, %s90
    %p97 = scmp.eq.s32.totalorder %s17, 1
    %p98 = por %p96, %p97
    %p99 = scmp.ne.s32.totalorder %s90, %s91
    %p100 = scmp.eq.s32.totalorder %s17, 0
    %p101 = por %p99, %p100
    %p102 = scmp.ne.s32.totalorder %s90, %s91
    %p103 = scmp.eq.s32.totalorder %s18, 1
    %p104 = por %p102, %p103
    %p106 = scmp.ne.s32.totalorder %s91, %s105
    %p107 = scmp.eq.s32.totalorder %s18, 0
    %p108 = por %p106, %p107
    %s110 = sadd.s32 %s109, 1
    %p113 = scmp.eq.s32.totalorder %s12, 1
    %p114 = scmp.ne.s32.totalorder %s109, %s111
    %p115 = scmp.eq.s32.totalorder %s12, 0
    %p116 = por %p114, %p115
    %p117 = scmp.ne.s32.totalorder %s109, %s111
    %p118 = scmp.eq.s32.totalorder %s17, 1
    %p119 = por %p117, %p118
    %p120 = scmp.ne.s32.totalorder %s111, %s112
    %p121 = scmp.eq.s32.totalorder %s17, 0
    %p122 = por %p120, %p121
    %p123 = scmp.ne.s32.totalorder %s111, %s112
    %p124 = scmp.eq.s32.totalorder %s18, 1
    %p125 = por %p123, %p124
    %p127 = scmp.ne.s32.totalorder %s112, %s126
    %p128 = scmp.eq.s32.totalorder %s18, 0
    %p129 = por %p127, %p128
    %s131 = sadd.s32 %s130, 1
    %p134 = scmp.eq.s32.totalorder %s12, 1
    %p135 = scmp.ne.s32.totalorder %s130, %s132
    %p136 = scmp.eq.s32.totalorder %s12, 0
    %p137 = por %p135, %p136
    %p138 = scmp.ne.s32.totalorder %s130, %s132
    %p139 = scmp.eq.s32.totalorder %s17, 1
    %p140 = por %p138, %p139
    %p141 = scmp.ne.s32.totalorder %s132, %s133
    %p142 = scmp.eq.s32.totalorder %s17, 0
    %p143 = por %p141, %p142
    %p144 = scmp.ne.s32.totalorder %s132, %s133
    %p145 = scmp.eq.s32.totalorder %s18, 1
    %p146 = por %p144, %p145
    %p148 = scmp.ne.s32.totalorder %s133, %s147
    %p149 = scmp.eq.s32.totalorder %s18, 0
    %p150 = por %p148, %p149
    %s151 = ssub.s32 %s12, %s19
    %p152 = scmp.eq.s32.totalorder %s151, 0
    %s154 = sadd.s32 %s153, 1
    %s155 = scalar_select %p152, %s153, %s154
    %p158 = pneg %p152
    %p159 = scmp.eq.s32.totalorder %s12, 1
    %p160 = por %p158, %p159
    %p161 = scmp.ne.s32.totalorder %s153, %s156
    %p162 = scmp.eq.s32.totalorder %s12, 0
    %p163 = por %p161, %p162
    %p164 = scmp.ne.s32.totalorder %s153, %s156
    %p165 = scmp.eq.s32.totalorder %s17, 1
    %p166 = por %p164, %p165
    %p167 = scmp.ne.s32.totalorder %s156, %s157
    %p168 = scmp.eq.s32.totalorder %s17, 0
    %p169 = por %p167, %p168
    %p170 = scmp.ne.s32.totalorder %s156, %s157
    %p171 = scmp.eq.s32.totalorder %s18, 1
    %p172 = por %p170, %p171
    %p174 = scmp.ne.s32.totalorder %s157, %s173
    %p175 = scmp.eq.s32.totalorder %s18, 0
    %p176 = por %p174, %p175
    %p177 = scmp.le.s32.totalorder 1, %s12
    %p178 = scmp.lt.s32.totalorder %s12, 3
    %p179 = pnand %p177, %p178
    %p180 = pneg %p179
    // Predicated region
    $region9: #{tpu_custom_call.1} parent=5 // pred_check
      _
    $region10: #{tpu_custom_call.1} parent=5 // pred_check_branch
      %182 = sbr.rel (%p179) target = $region12
    $region11: #{tpu_custom_call.1} parent=5 // pred_region
      %s183 = ssub.s32 %s12, 1
      // Predicated region
      $region13: #{tpu_custom_call.1} parent=11 // pred_check
        %p184 = pneg %p59
      $region14: #{tpu_custom_call.1} parent=11 // pred_check_branch
        %186 = sbr.rel (%p184) target = $region16
      $region15: #{tpu_custom_call.1} parent=11 // pred_region
        _
      $region16: #{tpu_custom_call.1} parent=11 // pred_fallthru
        _
      // Predicated region
      $region17: #{tpu_custom_call.1} parent=11 // pred_check
        %p187 = pneg %p80
      $region18: #{tpu_custom_call.1} parent=11 // pred_check_branch
        %189 = sbr.rel (%p187) target = $region20
      $region19: #{tpu_custom_call.1} parent=11 // pred_region
        _
      $region20: #{tpu_custom_call.1} parent=11 // pred_fallthru
        _
      // Predicated region
      $region21: #{tpu_custom_call.1} parent=11 // pred_check
        %p190 = pneg %p101
      $region22: #{tpu_custom_call.1} parent=11 // pred_check_branch
        %192 = sbr.rel (%p190) target = $region24
      $region23: #{tpu_custom_call.1} parent=11 // pred_region
        _
      $region24: #{tpu_custom_call.1} parent=11 // pred_fallthru
        _
      // Predicated region
      $region25: #{tpu_custom_call.1} parent=11 // pred_check
        %p193 = pneg %p122
      $region26: #{tpu_custom_call.1} parent=11 // pred_check_branch
        %195 = sbr.rel (%p193) target = $region28
      $region27: #{tpu_custom_call.1} parent=11 // pred_region
        _
      $region28: #{tpu_custom_call.1} parent=11 // pred_fallthru
        _
      // Predicated region
      $region29: #{tpu_custom_call.1} parent=11 // pred_check
        %p196 = pneg %p143
      $region30: #{tpu_custom_call.1} parent=11 // pred_check_branch
        %198 = sbr.rel (%p196) target = $region32
      $region31: #{tpu_custom_call.1} parent=11 // pred_region
        _
      $region32: #{tpu_custom_call.1} parent=11 // pred_fallthru
        _
    $region12: #{tpu_custom_call.1} parent=5 // pred_fallthru
      _
    %p199 = scmp.lt.s32.totalorder %s12, 2
    // Predicated region
    $region33: #{tpu_custom_call.1} parent=5 // pred_check
      %p200 = pneg %p199
    $region34: #{tpu_custom_call.1} parent=5 // pred_check_branch
      %202 = sbr.rel (%p200) target = $region36
    $region35: #{tpu_custom_call.1} parent=5 // pred_region
      // Predicated region
      $region37: #{tpu_custom_call.1} parent=35 // pred_check
        %p203 = pneg %p32
      $region38: #{tpu_custom_call.1} parent=35 // pred_check_branch
        %205 = sbr.rel (%p203) target = $region40
      $region39: #{tpu_custom_call.1} parent=35 // pred_region
        %s206 = smul.u32 8, %s12
        %p207 = scmp.lt.s32.totalorder %s206, 15
        %s208 = scalar_select %p207, %s206, 15
        %s209 = smul.addr %s208, 8
        %s210 = scalar_lea.vmem %s0, %s209
        %s211 = smul.u32 8, %s12
      $region40: #{tpu_custom_call.1} parent=35 // pred_fallthru
        _
    $region36: #{tpu_custom_call.1} parent=5 // pred_fallthru
      _
    %p212 = scmp.le.s32.totalorder 1, %s12
    %p213 = scmp.lt.s32.totalorder %s12, 3
    %p214 = pnand %p212, %p213
    %p215 = pneg %p214
    // Predicated region
    $region41: #{tpu_custom_call.1} parent=5 // pred_check
      _
    $region42: #{tpu_custom_call.1} parent=5 // pred_check_branch
      %217 = sbr.rel (%p214) target = $region44
    $region43: #{tpu_custom_call.1} parent=5 // pred_region
      %s218 = ssub.s32 %s12, 1
      %s219 = smul.u32 8, %s17
      %p220 = scmp.lt.s32.totalorder %s219, 15
      %s221 = scalar_select %p220, %s219, 15
      %s222 = smul.addr %s221, 8
      %s223 = scalar_lea.vmem %s0, %s222
      %p224 = pneg %p38
      %p225 = pneg %p35
      %p226 = pneg %p59
      %p227 = pneg %p56
      %p228 = pneg %p80
      %p229 = pneg %p77
      %p230 = pneg %p101
      %p231 = pneg %p98
      %p232 = pneg %p122
      %p233 = pneg %p119
      %p234 = pneg %p143
      %p235 = pneg %p140
      %p236 = pneg %p169
      %p237 = pneg %p166
      %s238 = smul.u32 4, %s17
      %p239 = scmp.lt.s32.totalorder %s238, 7
      %s240 = scalar_select %p239, %s238, 7
      %s241 = smul.addr %s240, 8
      %s242 = scalar_lea.vmem %s6, %s241
      %s243 = smul.u32 8, %s17
      %p244 = scmp.lt.s32.totalorder %s243, 15
      %s245 = scalar_select %p244, %s243, 15
      %s246 = smul.addr %s245, 8
      %s247 = scalar_lea.vmem %s0, %s246
      %s248 = smul.u32 8, %s17
      %s249 = smul.u32 4, %s17
      %p250 = scmp.lt.s32.totalorder %s249, 7
      %s251 = scalar_select %p250, %s249, 7
      %s252 = smul.addr %s251, 8
      %s253 = scalar_lea.vmem %s6, %s252
      %s254 = smul.u32 4, %s17
      %v255 = vld [vmem:[%s247] sm:$0xff]
      %v256 = vld [vmem:[%s247 + $0x8] sm:$0xff]
      %v257 = vld [vmem:[%s247 + $0x10] sm:$0xff]
      %v258 = vld [vmem:[%s247 + $0x18] sm:$0xff]
      %v259 = vld [vmem:[%s247 + $0x20] sm:$0xff]
      %v260 = vld [vmem:[%s247 + $0x28] sm:$0xff]
      %v261 = vld [vmem:[%s247 + $0x30] sm:$0xff]
      %v262 = vld [vmem:[%s247 + $0x38] sm:$0xff]
      %v263 = vld [vmem:[%s1] sm:$0xff]
      %v264 = vld [vmem:[%s1 + $0x8] sm:$0xff]
      %vm265 = vcmask 130048
      %v267 = vsel %vm265, %v255, 0
      %v270 = vsel %vm265, %v256, 0
      %v273 = vsel %vm265, %v257, 0
      %v276 = vsel %vm265, %v258, 0
      %v279 = vsel %vm265, %v259, 0
      %v282 = vsel %vm265, %v260, 0
      %v285 = vsel %vm265, %v261, 0
      %v288 = vsel %vm265, %v262, 0
      %290 = vmatprep.subr.mxu0 0.0
      %291 = vmatpush1.msra.mxu0 %v263
      %292 = vmatprep.subr.mxu0 0.0
      %293 = vmatpush1.msra.mxu0 %v264
      %294 = vmatprep.subr.mxu0 0.0
      %295 = vmatpush1.msra.mxu0 0.0
      %296 = vmatprep.subr.mxu0 0.0
      %297 = vmatpush1.msra.mxu0 0.0
      %298 = vmatprep.subr.mxu0 0.0
      %299 = vmatpush1.msra.mxu0 0.0
      %300 = vmatprep.subr.mxu0 0.0
      %301 = vmatpush1.msra.mxu0 0.0
      %302 = vmatprep.subr.mxu0 0.0
      %303 = vmatpush1.msra.mxu0 0.0
      %304 = vmatprep.subr.mxu0 0.0
      %305 = vmatpush1.msra.mxu0 0.0
      %306 = vmatprep.subr.mxu0 0.0
      %307 = vmatpush1.msra.mxu0 0.0
      %308 = vmatprep.subr.mxu0 0.0
      %309 = vmatpush1.msra.mxu0 0.0
      %310 = vmatprep.subr.mxu0 0.0
      %311 = vmatpush1.msra.mxu0 0.0
      %312 = vmatprep.subr.mxu0 0.0
      %313 = vmatpush1.msra.mxu0 0.0
      %314 = vmatprep.subr.mxu0 0.0
      %315 = vmatpush1.msra.mxu0 0.0
      %316 = vmatprep.subr.mxu0 0.0
      %317 = vmatpush1.msra.mxu0 0.0
      %318 = vmatprep.subr.mxu0 0.0
      %319 = vmatpush1.msra.mxu0 0.0
      %320 = vmatprep.subr.mxu0 0.0
      %321 = vmatpush1.msra.mxu0 0.0
      %322 = vmatprep.subr.mxu0 0.0
      %323 = vmatpush1.msra.mxu0 0.0
      %324 = vmatprep.subr.mxu0 0.0
      %325 = vmatpush1.msra.mxu0 0.0
      %326 = vmatprep.subr.mxu0 0.0
      %327 = vmatpush1.msra.mxu0 0.0
      %328 = vmatprep.subr.mxu0 0.0
      %329 = vmatpush1.msra.mxu0 0.0
      %330 = vmatprep.subr.mxu0 0.0
      %331 = vmatpush1.msra.mxu0 0.0
      %332 = vmatprep.subr.mxu0 0.0
      %333 = vmatpush1.msra.mxu0 0.0
      %334 = vmatprep.subr.mxu0 0.0
      %335 = vmatpush1.msra.mxu0 0.0
      %336 = vmatprep.subr.mxu0 0.0
      %337 = vmatpush1.msra.mxu0 0.0
      %338 = vmatprep.subr.mxu0 0.0
      %339 = vmatpush1.msra.mxu0 0.0
      %340 = vmatprep.subr.mxu0 0.0
      %341 = vmatpush1.msra.mxu0 0.0
      %342 = vmatprep.subr.mxu0 0.0
      %343 = vmatpush1.msra.mxu0 0.0
      %344 = vmatprep.subr.mxu0 0.0
      %345 = vmatpush1.msra.mxu0 0.0
      %346 = vmatprep.subr.mxu0 0.0
      %347 = vmatpush1.msra.mxu0 0.0
      %348 = vmatprep.subr.mxu0 0.0
      %349 = vmatpush1.msra.mxu0 0.0
      %350 = vmatprep.subr.mxu0 0.0
      %351 = vmatpush1.msra.mxu0 0.0
      %352 = vmatprep.subr.mxu0 0.0
      %353 = vmatpush1.msra.mxu0 0.0
      %354 = vmatprep.mubr.f32.mxu0 0.0
      %355 = vmatmul.mubr.f32.gmra.mrb[0].mxu0 %v267
      %v356 = vpop.f32.mrb[0].mxu0
      %v357 = vadd.f32 0.0, %v356
      %v358 = vpop.f32.mrb[0].mxu0
      %359 = vmatprep.mubr.f32.mxu0 0.0
      %360 = vmatmul.mubr.f32.gmra.mrb[0].mxu0 %v270
      %v361 = vpop.f32.mrb[0].mxu0
      %v362 = vadd.f32 0.0, %v361
      %v363 = vpop.f32.mrb[0].mxu0
      %364 = vmatprep.mubr.f32.mxu0 0.0
      %365 = vmatmul.mubr.f32.gmra.mrb[0].mxu0 %v273
      %v366 = vpop.f32.mrb[0].mxu0
      %v367 = vadd.f32 0.0, %v366
      %v368 = vpop.f32.mrb[0].mxu0
      %369 = vmatprep.mubr.f32.mxu0 0.0
      %370 = vmatmul.mubr.f32.gmra.mrb[0].mxu0 %v276
      %v371 = vpop.f32.mrb[0].mxu0
      %v372 = vadd.f32 0.0, %v371
      %v373 = vpop.f32.mrb[0].mxu0
      %374 = vmatprep.mubr.f32.mxu0 0.0
      %375 = vmatmul.mubr.f32.gmra.mrb[0].mxu0 %v279
      %v376 = vpop.f32.mrb[0].mxu0
      %v377 = vadd.f32 0.0, %v376
      %v378 = vpop.f32.mrb[0].mxu0
      %379 = vmatprep.mubr.f32.mxu0 0.0
      %380 = vmatmul.mubr.f32.gmra.mrb[0].mxu0 %v282
      %v381 = vpop.f32.mrb[0].mxu0
      %v382 = vadd.f32 0.0, %v381
      %v383 = vpop.f32.mrb[0].mxu0
      %384 = vmatprep.mubr.f32.mxu0 0.0
      %385 = vmatmul.mubr.f32.gmra.mrb[0].mxu0 %v285
      %v386 = vpop.f32.mrb[0].mxu0
      %v387 = vadd.f32 0.0, %v386
      %v388 = vpop.f32.mrb[0].mxu0
      %389 = vmatprep.mubr.f32.mxu0 0.0
      %390 = vmatmul.mubr.f32.gmra.mrb[0].mxu0 %v288
      %v391 = vpop.f32.mrb[0].mxu0
      %v392 = vadd.f32 0.0, %v391
      %v393 = vpop.f32.mrb[0].mxu0
      %394 = vdwg.mxu0
      %s395 = scalar_lea.vmem %s1, 16
      %v396 = vld [vmem:[%s395] sm:$0xff]
      %v397 = vld [vmem:[%s395 + $0x8] sm:$0xff]
      %398 = vmatprep.subr.mxu0 0.0
      %399 = vmatpush1.msra.mxu0 %v396
      %400 = vmatprep.subr.mxu0 0.0
      %401 = vmatpush1.msra.mxu0 %v397
      %402 = vmatprep.subr.mxu0 0.0
      %403 = vmatpush1.msra.mxu0 0.0
      %404 = vmatprep.subr.mxu0 0.0
      %405 = vmatpush1.msra.mxu0 0.0
      %406 = vmatprep.subr.mxu0 0.0
      %407 = vmatpush1.msra.mxu0 0.0
      %408 = vmatprep.subr.mxu0 0.0
      %409 = vmatpush1.msra.mxu0 0.0
      %410 = vmatprep.subr.mxu0 0.0
      %411 = vmatpush1.msra.mxu0 0.0
      %412 = vmatprep.subr.mxu0 0.0
      %413 = vmatpush1.msra.mxu0 0.0
      %414 = vmatprep.subr.mxu0 0.0
      %415 = vmatpush1.msra.mxu0 0.0
      %416 = vmatprep.subr.mxu0 0.0
      %417 = vmatpush1.msra.mxu0 0.0
      %418 = vmatprep.subr.mxu0 0.0
      %419 = vmatpush1.msra.mxu0 0.0
      %420 = vmatprep.subr.mxu0 0.0
      %421 = vmatpush1.msra.mxu0 0.0
      %422 = vmatprep.subr.mxu0 0.0
      %423 = vmatpush1.msra.mxu0 0.0
      %424 = vmatprep.subr.mxu0 0.0
      %425 = vmatpush1.msra.mxu0 0.0
      %426 = vmatprep.subr.mxu0 0.0
      %427 = vmatpush1.msra.mxu0 0.0
      %428 = vmatprep.subr.mxu0 0.0
      %429 = vmatpush1.msra.mxu0 0.0
      %430 = vmatprep.subr.mxu0 0.0
      %431 = vmatpush1.msra.mxu0 0.0
      %432 = vmatprep.subr.mxu0 0.0
      %433 = vmatpush1.msra.mxu0 0.0
      %434 = vmatprep.subr.mxu0 0.0
      %435 = vmatpush1.msra.mxu0 0.0
      %436 = vmatprep.subr.mxu0 0.0
      %437 = vmatpush1.msra.mxu0 0.0
      %438 = vmatprep.subr.mxu0 0.0
      %439 = vmatpush1.msra.mxu0 0.0
      %440 = vmatprep.subr.mxu0 0.0
      %441 = vmatpush1.msra.mxu0 0.0
      %442 = vmatprep.subr.mxu0 0.0
      %443 = vmatpush1.msra.mxu0 0.0
      %444 = vmatprep.subr.mxu0 0.0
      %445 = vmatpush1.msra.mxu0 0.0
      %446 = vmatprep.subr.mxu0 0.0
      %447 = vmatpush1.msra.mxu0 0.0
      %448 = vmatprep.subr.mxu0 0.0
      %449 = vmatpush1.msra.mxu0 0.0
      %450 = vmatprep.subr.mxu0 0.0
      %451 = vmatpush1.msra.mxu0 0.0
      %452 = vmatprep.subr.mxu0 0.0
      %453 = vmatpush1.msra.mxu0 0.0
      %454 = vmatprep.subr.mxu0 0.0
      %455 = vmatpush1.msra.mxu0 0.0
      %456 = vmatprep.subr.mxu0 0.0
      %457 = vmatpush1.msra.mxu0 0.0
      %458 = vmatprep.subr.mxu0 0.0
      %459 = vmatpush1.msra.mxu0 0.0
      %460 = vmatprep.subr.mxu0 0.0
      %461 = vmatpush1.msra.mxu0 0.0
      %462 = vmatprep.mubr.f32.mxu0 0.0
      %463 = vmatmul.mubr.f32.gmra.mrb[0].mxu0 %v267
      %v464 = vpop.f32.mrb[0].mxu0
      %v465 = vadd.f32 0.0, %v464
      %v466 = vpop.f32.mrb[0].mxu0
      %467 = vmatprep.mubr.f32.mxu0 0.0
      %468 = vmatmul.mubr.f32.gmra.mrb[0].mxu0 %v270
      %v469 = vpop.f32.mrb[0].mxu0
      %v470 = vadd.f32 0.0, %v469
      %v471 = vpop.f32.mrb[0].mxu0
      %472 = vmatprep.mubr.f32.mxu0 0.0
      %473 = vmatmul.mubr.f32.gmra.mrb[0].mxu0 %v273
      %v474 = vpop.f32.mrb[0].mxu0
      %v475 = vadd.f32 0.0, %v474
      %v476 = vpop.f32.mrb[0].mxu0
      %477 = vmatprep.mubr.f32.mxu0 0.0
      %478 = vmatmul.mubr.f32.gmra.mrb[0].mxu0 %v276
      %v479 = vpop.f32.mrb[0].mxu0
      %v480 = vadd.f32 0.0, %v479
      %v481 = vpop.f32.mrb[0].mxu0
      %482 = vmatprep.mubr.f32.mxu0 0.0
      %483 = vmatmul.mubr.f32.gmra.mrb[0].mxu0 %v279
      %v484 = vpop.f32.mrb[0].mxu0
      %v485 = vadd.f32 0.0, %v484
      %v486 = vpop.f32.mrb[0].mxu0
      %487 = vmatprep.mubr.f32.mxu0 0.0
      %488 = vmatmul.mubr.f32.gmra.mrb[0].mxu0 %v282
      %v489 = vpop.f32.mrb[0].mxu0
      %v490 = vadd.f32 0.0, %v489
      %v491 = vpop.f32.mrb[0].mxu0
      %492 = vmatprep.mubr.f32.mxu0 0.0
      %493 = vmatmul.mubr.f32.gmra.mrb[0].mxu0 %v285
      %v494 = vpop.f32.mrb[0].mxu0
      %v495 = vadd.f32 0.0, %v494
      %v496 = vpop.f32.mrb[0].mxu0
      %497 = vmatprep.mubr.f32.mxu0 0.0
      %498 = vmatmul.mubr.f32.gmra.mrb[0].mxu0 %v288
      %v499 = vpop.f32.mrb[0].mxu0
      %v500 = vadd.f32 0.0, %v499
      %v501 = vpop.f32.mrb[0].mxu0
      %502 = vdwg.mxu0
      %503 = vxpose.xlu0.b32.start [1/16] %v357, 128
      %504 = vxpose.xlu0.b32.cont [2/16] %v362, 128
      %505 = vxpose.xlu0.b32.cont [3/16] 0.0, 128
      %506 = vxpose.xlu0.b32.cont [4/16] 0.0, 128
      %507 = vxpose.xlu0.b32.cont [5/16] 0.0, 128
      %508 = vxpose.xlu0.b32.cont [6/16] 0.0, 128
      %509 = vxpose.xlu0.b32.cont [7/16] 0.0, 128
      %510 = vxpose.xlu0.b32.cont [8/16] 0.0, 128
      %511 = vxpose.xlu0.b32.cont [9/16] 0.0, 128
      %512 = vxpose.xlu0.b32.cont [10/16] 0.0, 128
      %513 = vxpose.xlu0.b32.cont [11/16] 0.0, 128
      %514 = vxpose.xlu0.b32.cont [12/16] 0.0, 128
      %515 = vxpose.xlu0.b32.cont [13/16] 0.0, 128
      %516 = vxpose.xlu0.b32.cont [14/16] 0.0, 128
      %517 = vxpose.xlu0.b32.cont [15/16] 0.0, 128
      %518 = vxpose.xlu0.b32.end [16/16] 0.0, 128
      %v519 = vpop.trf.xlu0
      %v520 = vpop.trf.xlu0
      %v521 = vpop.trf.xlu0
      %v522 = vpop.trf.xlu0
      %v523 = vpop.trf.xlu0
      %v524 = vpop.trf.xlu0
      %v525 = vpop.trf.xlu0
      %v526 = vpop.trf.xlu0
      %v527 = vpop.trf.xlu0
      %v528 = vpop.trf.xlu0
      %v529 = vpop.trf.xlu0
      %v530 = vpop.trf.xlu0
      %v531 = vpop.trf.xlu0
      %v532 = vpop.trf.xlu0
      %v533 = vpop.trf.xlu0
      %v534 = vpop.trf.xlu0
      %535 = vxpose.xlu0.b32.start [1/16] %v367, 128
      %536 = vxpose.xlu0.b32.cont [2/16] %v372, 128
      %537 = vxpose.xlu0.b32.cont [3/16] 0.0, 128
      %538 = vxpose.xlu0.b32.cont [4/16] 0.0, 128
      %539 = vxpose.xlu0.b32.cont [5/16] 0.0, 128
      %540 = vxpose.xlu0.b32.cont [6/16] 0.0, 128
      %541 = vxpose.xlu0.b32.cont [7/16] 0.0, 128
      %542 = vxpose.xlu0.b32.cont [8/16] 0.0, 128
      %543 = vxpose.xlu0.b32.cont [9/16] 0.0, 128
      %544 = vxpose.xlu0.b32.cont [10/16] 0.0, 128
      %545 = vxpose.xlu0.b32.cont [11/16] 0.0, 128
      %546 = vxpose.xlu0.b32.cont [12/16] 0.0, 128
      %547 = vxpose.xlu0.b32.cont [13/16] 0.0, 128
      %548 = vxpose.xlu0.b32.cont [14/16] 0.0, 128
      %549 = vxpose.xlu0.b32.cont [15/16] 0.0, 128
      %550 = vxpose.xlu0.b32.end [16/16] 0.0, 128
      %v551 = vpop.trf.xlu0
      %v552 = vpop.trf.xlu0
      %v553 = vpop.trf.xlu0
      %v554 = vpop.trf.xlu0
      %v555 = vpop.trf.xlu0
      %v556 = vpop.trf.xlu0
      %v557 = vpop.trf.xlu0
      %v558 = vpop.trf.xlu0
      %v559 = vpop.trf.xlu0
      %v560 = vpop.trf.xlu0
      %v561 = vpop.trf.xlu0
      %v562 = vpop.trf.xlu0
      %v563 = vpop.trf.xlu0
      %v564 = vpop.trf.xlu0
      %v565 = vpop.trf.xlu0
      %v566 = vpop.trf.xlu0
      %567 = vxpose.xlu0.b32.start [1/16] %v377, 128
      %568 = vxpose.xlu0.b32.cont [2/16] %v382, 128
      %569 = vxpose.xlu0.b32.cont [3/16] 0.0, 128
      %570 = vxpose.xlu0.b32.cont [4/16] 0.0, 128
      %571 = vxpose.xlu0.b32.cont [5/16] 0.0, 128
      %572 = vxpose.xlu0.b32.cont [6/16] 0.0, 128
      %573 = vxpose.xlu0.b32.cont [7/16] 0.0, 128
      %574 = vxpose.xlu0.b32.cont [8/16] 0.0, 128
      %575 = vxpose.xlu0.b32.cont [9/16] 0.0, 128
      %576 = vxpose.xlu0.b32.cont [10/16] 0.0, 128
      %577 = vxpose.xlu0.b32.cont [11/16] 0.0, 128
      %578 = vxpose.xlu0.b32.cont [12/16] 0.0, 128
      %579 = vxpose.xlu0.b32.cont [13/16] 0.0, 128
      %580 = vxpose.xlu0.b32.cont [14/16] 0.0, 128
      %581 = vxpose.xlu0.b32.cont [15/16] 0.0, 128
      %582 = vxpose.xlu0.b32.end [16/16] 0.0, 128
      %v583 = vpop.trf.xlu0
      %v584 = vpop.trf.xlu0
      %v585 = vpop.trf.xlu0
      %v586 = vpop.trf.xlu0
      %v587 = vpop.trf.xlu0
      %v588 = vpop.trf.xlu0
      %v589 = vpop.trf.xlu0
      %v590 = vpop.trf.xlu0
      %v591 = vpop.trf.xlu0
      %v592 = vpop.trf.xlu0
      %v593 = vpop.trf.xlu0
      %v594 = vpop.trf.xlu0
      %v595 = vpop.trf.xlu0
      %v596 = vpop.trf.xlu0
      %v597 = vpop.trf.xlu0
      %v598 = vpop.trf.xlu0
      %599 = vxpose.xlu0.b32.start [1/16] %v387, 128
      %600 = vxpose.xlu0.b32.cont [2/16] %v392, 128
      %601 = vxpose.xlu0.b32.cont [3/16] 0.0, 128
      %602 = vxpose.xlu0.b32.cont [4/16] 0.0, 128
      %603 = vxpose.xlu0.b32.cont [5/16] 0.0, 128
      %604 = vxpose.xlu0.b32.cont [6/16] 0.0, 128
      %605 = vxpose.xlu0.b32.cont [7/16] 0.0, 128
      %606 = vxpose.xlu0.b32.cont [8/16] 0.0, 128
      %607 = vxpose.xlu0.b32.cont [9/16] 0.0, 128
      %608 = vxpose.xlu0.b32.cont [10/16] 0.0, 128
      %609 = vxpose.xlu0.b32.cont [11/16] 0.0, 128
      %610 = vxpose.xlu0.b32.cont [12/16] 0.0, 128
      %611 = vxpose.xlu0.b32.cont [13/16] 0.0, 128
      %612 = vxpose.xlu0.b32.cont [14/16] 0.0, 128
      %613 = vxpose.xlu0.b32.cont [15/16] 0.0, 128
      %614 = vxpose.xlu0.b32.end [16/16] 0.0, 128
      %v615 = vpop.trf.xlu0
      %v616 = vpop.trf.xlu0
      %v617 = vpop.trf.xlu0
      %v618 = vpop.trf.xlu0
      %v619 = vpop.trf.xlu0
      %v620 = vpop.trf.xlu0
      %v621 = vpop.trf.xlu0
      %v622 = vpop.trf.xlu0
      %v623 = vpop.trf.xlu0
      %v624 = vpop.trf.xlu0
      %v625 = vpop.trf.xlu0
      %v626 = vpop.trf.xlu0
      %v627 = vpop.trf.xlu0
      %v628 = vpop.trf.xlu0
      %v629 = vpop.trf.xlu0
      %v630 = vpop.trf.xlu0
      %631 = vxpose.xlu0.b32.start [1/16] %v465, 128
      %632 = vxpose.xlu0.b32.cont [2/16] %v470, 128
      %633 = vxpose.xlu0.b32.cont [3/16] 0.0, 128
      %634 = vxpose.xlu0.b32.cont [4/16] 0.0, 128
      %635 = vxpose.xlu0.b32.cont [5/16] 0.0, 128
      %636 = vxpose.xlu0.b32.cont [6/16] 0.0, 128
      %637 = vxpose.xlu0.b32.cont [7/16] 0.0, 128
      %638 = vxpose.xlu0.b32.cont [8/16] 0.0, 128
      %639 = vxpose.xlu0.b32.cont [9/16] 0.0, 128
      %640 = vxpose.xlu0.b32.cont [10/16] 0.0, 128
      %641 = vxpose.xlu0.b32.cont [11/16] 0.0, 128
      %642 = vxpose.xlu0.b32.cont [12/16] 0.0, 128
      %643 = vxpose.xlu0.b32.cont [13/16] 0.0, 128
      %644 = vxpose.xlu0.b32.cont [14/16] 0.0, 128
      %645 = vxpose.xlu0.b32.cont [15/16] 0.0, 128
      %646 = vxpose.xlu0.b32.end [16/16] 0.0, 128
      %v647 = vpop.trf.xlu0
      %v648 = vpop.trf.xlu0
      %v649 = vpop.trf.xlu0
      %v650 = vpop.trf.xlu0
      %v651 = vpop.trf.xlu0
      %v652 = vpop.trf.xlu0
      %v653 = vpop.trf.xlu0
      %v654 = vpop.trf.xlu0
      %v655 = vpop.trf.xlu0
      %v656 = vpop.trf.xlu0
      %v657 = vpop.trf.xlu0
      %v658 = vpop.trf.xlu0
      %v659 = vpop.trf.xlu0
      %v660 = vpop.trf.xlu0
      %v661 = vpop.trf.xlu0
      %v662 = vpop.trf.xlu0
      %663 = vxpose.xlu0.b32.start [1/16] %v475, 128
      %664 = vxpose.xlu0.b32.cont [2/16] %v480, 128
      %665 = vxpose.xlu0.b32.cont [3/16] 0.0, 128
      %666 = vxpose.xlu0.b32.cont [4/16] 0.0, 128
      %667 = vxpose.xlu0.b32.cont [5/16] 0.0, 128
      %668 = vxpose.xlu0.b32.cont [6/16] 0.0, 128
      %669 = vxpose.xlu0.b32.cont [7/16] 0.0, 128
      %670 = vxpose.xlu0.b32.cont [8/16] 0.0, 128
      %671 = vxpose.xlu0.b32.cont [9/16] 0.0, 128
      %672 = vxpose.xlu0.b32.cont [10/16] 0.0, 128
      %673 = vxpose.xlu0.b32.cont [11/16] 0.0, 128
      %674 = vxpose.xlu0.b32.cont [12/16] 0.0, 128
      %675 = vxpose.xlu0.b32.cont [13/16] 0.0, 128
      %676 = vxpose.xlu0.b32.cont [14/16] 0.0, 128
      %677 = vxpose.xlu0.b32.cont [15/16] 0.0, 128
      %678 = vxpose.xlu0.b32.end [16/16] 0.0, 128
      %v679 = vpop.trf.xlu0
      %v680 = vpop.trf.xlu0
      %v681 = vpop.trf.xlu0
      %v682 = vpop.trf.xlu0
      %v683 = vpop.trf.xlu0
      %v684 = vpop.trf.xlu0
      %v685 = vpop.trf.xlu0
      %v686 = vpop.trf.xlu0
      %v687 = vpop.trf.xlu0
      %v688 = vpop.trf.xlu0
      %v689 = vpop.trf.xlu0
      %v690 = vpop.trf.xlu0
      %v691 = vpop.trf.xlu0
      %v692 = vpop.trf.xlu0
      %v693 = vpop.trf.xlu0
      %v694 = vpop.trf.xlu0
      %695 = vxpose.xlu0.b32.start [1/16] %v485, 128
      %696 = vxpose.xlu0.b32.cont [2/16] %v490, 128
      %697 = vxpose.xlu0.b32.cont [3/16] 0.0, 128
      %698 = vxpose.xlu0.b32.cont [4/16] 0.0, 128
      %699 = vxpose.xlu0.b32.cont [5/16] 0.0, 128
      %700 = vxpose.xlu0.b32.cont [6/16] 0.0, 128
      %701 = vxpose.xlu0.b32.cont [7/16] 0.0, 128
      %702 = vxpose.xlu0.b32.cont [8/16] 0.0, 128
      %703 = vxpose.xlu0.b32.cont [9/16] 0.0, 128
      %704 = vxpose.xlu0.b32.cont [10/16] 0.0, 128
      %705 = vxpose.xlu0.b32.cont [11/16] 0.0, 128
      %706 = vxpose.xlu0.b32.cont [12/16] 0.0, 128
      %707 = vxpose.xlu0.b32.cont [13/16] 0.0, 128
      %708 = vxpose.xlu0.b32.cont [14/16] 0.0, 128
      %709 = vxpose.xlu0.b32.cont [15/16] 0.0, 128
      %710 = vxpose.xlu0.b32.end [16/16] 0.0, 128
      %v711 = vpop.trf.xlu0
      %v712 = vpop.trf.xlu0
      %v713 = vpop.trf.xlu0
      %v714 = vpop.trf.xlu0
      %v715 = vpop.trf.xlu0
      %v716 = vpop.trf.xlu0
      %v717 = vpop.trf.xlu0
      %v718 = vpop.trf.xlu0
      %v719 = vpop.trf.xlu0
      %v720 = vpop.trf.xlu0
      %v721 = vpop.trf.xlu0
      %v722 = vpop.trf.xlu0
      %v723 = vpop.trf.xlu0
      %v724 = vpop.trf.xlu0
      %v725 = vpop.trf.xlu0
      %v726 = vpop.trf.xlu0
      %727 = vxpose.xlu0.b32.start [1/16] %v495, 128
      %728 = vxpose.xlu0.b32.cont [2/16] %v500, 128
      %729 = vxpose.xlu0.b32.cont [3/16] 0.0, 128
      %730 = vxpose.xlu0.b32.cont [4/16] 0.0, 128
      %731 = vxpose.xlu0.b32.cont [5/16] 0.0, 128
      %732 = vxpose.xlu0.b32.cont [6/16] 0.0, 128
      %733 = vxpose.xlu0.b32.cont [7/16] 0.0, 128
      %734 = vxpose.xlu0.b32.cont [8/16] 0.0, 128
      %735 = vxpose.xlu0.b32.cont [9/16] 0.0, 128
      %736 = vxpose.xlu0.b32.cont [10/16] 0.0, 128
      %737 = vxpose.xlu0.b32.cont [11/16] 0.0, 128
      %738 = vxpose.xlu0.b32.cont [12/16] 0.0, 128
      %739 = vxpose.xlu0.b32.cont [13/16] 0.0, 128
      %740 = vxpose.xlu0.b32.cont [14/16] 0.0, 128
      %741 = vxpose.xlu0.b32.cont [15/16] 0.0, 128
      %742 = vxpose.xlu0.b32.end [16/16] 0.0, 128
      %v743 = vpop.trf.xlu0
      %v744 = vpop.trf.xlu0
      %v745 = vpop.trf.xlu0
      %v746 = vpop.trf.xlu0
      %v747 = vpop.trf.xlu0
      %v748 = vpop.trf.xlu0
      %v749 = vpop.trf.xlu0
      %v750 = vpop.trf.xlu0
      %v751 = vpop.trf.xlu0
      %v752 = vpop.trf.xlu0
      %v753 = vpop.trf.xlu0
      %v754 = vpop.trf.xlu0
      %v755 = vpop.trf.xlu0
      %v756 = vpop.trf.xlu0
      %v757 = vpop.trf.xlu0
      %v758 = vpop.trf.xlu0
      %v759 = vld [vmem:[%s2] sm:$0xff]
      %v760 = vld [vmem:[%s2 + $0x8] sm:$0xff]
      %s761 = scalar_lea.vmem %s2, 16
      %v762 = vld [vmem:[%s761] sm:$0xff]
      %v763 = vld [vmem:[%s761 + $0x8] sm:$0xff]
      %v765 = vsel %vm265, %v519, 0
      %v768 = vsel %vm265, %v520, 0
      %v771 = vsel %vm265, %v551, 0
      %v774 = vsel %vm265, %v552, 0
      %v777 = vsel %vm265, %v583, 0
      %v780 = vsel %vm265, %v584, 0
      %v783 = vsel %vm265, %v615, 0
      %v786 = vsel %vm265, %v616, 0
      %788 = vmatprep.subr.mxu0 0.0
      %789 = vmatpush1.msra.mxu0 %v759
      %790 = vmatprep.subr.mxu0 0.0
      %791 = vmatpush1.msra.mxu0 %v760
      %792 = vmatprep.subr.mxu0 0.0
      %793 = vmatpush1.msra.mxu0 0.0
      %794 = vmatprep.subr.mxu0 0.0
      %795 = vmatpush1.msra.mxu0 0.0
      %796 = vmatprep.subr.mxu0 0.0
      %797 = vmatpush1.msra.mxu0 0.0
      %798 = vmatprep.subr.mxu0 0.0
      %799 = vmatpush1.msra.mxu0 0.0
      %800 = vmatprep.subr.mxu0 0.0
      %801 = vmatpush1.msra.mxu0 0.0
      %802 = vmatprep.subr.mxu0 0.0
      %803 = vmatpush1.msra.mxu0 0.0
      %804 = vmatprep.subr.mxu0 0.0
      %805 = vmatpush1.msra.mxu0 0.0
      %806 = vmatprep.subr.mxu0 0.0
      %807 = vmatpush1.msra.mxu0 0.0
      %808 = vmatprep.subr.mxu0 0.0
      %809 = vmatpush1.msra.mxu0 0.0
      %810 = vmatprep.subr.mxu0 0.0
      %811 = vmatpush1.msra.mxu0 0.0
      %812 = vmatprep.subr.mxu0 0.0
      %813 = vmatpush1.msra.mxu0 0.0
      %814 = vmatprep.subr.mxu0 0.0
      %815 = vmatpush1.msra.mxu0 0.0
      %816 = vmatprep.subr.mxu0 0.0
      %817 = vmatpush1.msra.mxu0 0.0
      %818 = vmatprep.subr.mxu0 0.0
      %819 = vmatpush1.msra.mxu0 0.0
      %820 = vmatprep.subr.mxu0 0.0
      %821 = vmatpush1.msra.mxu0 0.0
      %822 = vmatprep.subr.mxu0 0.0
      %823 = vmatpush1.msra.mxu0 0.0
      %824 = vmatprep.subr.mxu0 0.0
      %825 = vmatpush1.msra.mxu0 0.0
      %826 = vmatprep.subr.mxu0 0.0
      %827 = vmatpush1.msra.mxu0 0.0
      %828 = vmatprep.subr.mxu0 0.0
      %829 = vmatpush1.msra.mxu0 0.0
      %830 = vmatprep.subr.mxu0 0.0
      %831 = vmatpush1.msra.mxu0 0.0
      %832 = vmatprep.subr.mxu0 0.0
      %833 = vmatpush1.msra.mxu0 0.0
      %834 = vmatprep.subr.mxu0 0.0
      %835 = vmatpush1.msra.mxu0 0.0
      %836 = vmatprep.subr.mxu0 0.0
      %837 = vmatpush1.msra.mxu0 0.0
      %838 = vmatprep.subr.mxu0 0.0
      %839 = vmatpush1.msra.mxu0 0.0
      %840 = vmatprep.subr.mxu0 0.0
      %841 = vmatpush1.msra.mxu0 0.0
      %842 = vmatprep.subr.mxu0 0.0
      %843 = vmatpush1.msra.mxu0 0.0
      %844 = vmatprep.subr.mxu0 0.0
      %845 = vmatpush1.msra.mxu0 0.0
      %846 = vmatprep.subr.mxu0 0.0
      %847 = vmatpush1.msra.mxu0 0.0
      %848 = vmatprep.subr.mxu0 0.0
      %849 = vmatpush1.msra.mxu0 0.0
      %850 = vmatprep.subr.mxu0 0.0
      %851 = vmatpush1.msra.mxu0 0.0
      %852 = vmatprep.mubr.f32.mxu0 0.0
      %853 = vmatmul.mubr.f32.gmra.mrb[0].mxu0 %v765
      %v854 = vpop.f32.mrb[0].mxu0
      %v855 = vadd.f32 0.0, %v854
      %v856 = vpop.f32.mrb[0].mxu0
      %857 = vmatprep.mubr.f32.mxu0 0.0
      %858 = vmatmul.mubr.f32.gmra.mrb[0].mxu0 %v768
      %v859 = vpop.f32.mrb[0].mxu0
      %v860 = vadd.f32 0.0, %v859
      %v861 = vpop.f32.mrb[0].mxu0
      %862 = vmatprep.mubr.f32.mxu0 0.0
      %863 = vmatmul.mubr.f32.gmra.mrb[0].mxu0 %v771
      %v864 = vpop.f32.mrb[0].mxu0
      %v865 = vadd.f32 0.0, %v864
      %v866 = vpop.f32.mrb[0].mxu0
      %867 = vmatprep.mubr.f32.mxu0 0.0
      %868 = vmatmul.mubr.f32.gmra.mrb[0].mxu0 %v774
      %v869 = vpop.f32.mrb[0].mxu0
      %v870 = vadd.f32 0.0, %v869
      %v871 = vpop.f32.mrb[0].mxu0
      %872 = vmatprep.mubr.f32.mxu0 0.0
      %873 = vmatmul.mubr.f32.gmra.mrb[0].mxu0 %v777
      %v874 = vpop.f32.mrb[0].mxu0
      %v875 = vadd.f32 0.0, %v874
      %v876 = vpop.f32.mrb[0].mxu0
      %877 = vmatprep.mubr.f32.mxu0 0.0
      %878 = vmatmul.mubr.f32.gmra.mrb[0].mxu0 %v780
      %v879 = vpop.f32.mrb[0].mxu0
      %v880 = vadd.f32 0.0, %v879
      %v881 = vpop.f32.mrb[0].mxu0
      %882 = vmatprep.mubr.f32.mxu0 0.0
      %883 = vmatmul.mubr.f32.gmra.mrb[0].mxu0 %v783
      %v884 = vpop.f32.mrb[0].mxu0
      %v885 = vadd.f32 0.0, %v884
      %v886 = vpop.f32.mrb[0].mxu0
      %887 = vmatprep.mubr.f32.mxu0 0.0
      %888 = vmatmul.mubr.f32.gmra.mrb[0].mxu0 %v786
      %v889 = vpop.f32.mrb[0].mxu0
      %v890 = vadd.f32 0.0, %v889
      %v891 = vpop.f32.mrb[0].mxu0
      %892 = vdwg.mxu0
      %v894 = vsel %vm265, %v647, 0
      %v897 = vsel %vm265, %v648, 0
      %v900 = vsel %vm265, %v679, 0
      %v903 = vsel %vm265, %v680, 0
      %v906 = vsel %vm265, %v711, 0
      %v909 = vsel %vm265, %v712, 0
      %v912 = vsel %vm265, %v743, 0
      %v915 = vsel %vm265, %v744, 0
      %917 = vmatprep.subr.mxu0 0.0
      %918 = vmatpush1.msra.mxu0 %v762
      %919 = vmatprep.subr.mxu0 0.0
      %920 = vmatpush1.msra.mxu0 %v763
      %921 = vmatprep.subr.mxu0 0.0
      %922 = vmatpush1.msra.mxu0 0.0
      %923 = vmatprep.subr.mxu0 0.0
      %924 = vmatpush1.msra.mxu0 0.0
      %925 = vmatprep.subr.mxu0 0.0
      %926 = vmatpush1.msra.mxu0 0.0
      %927 = vmatprep.subr.mxu0 0.0
      %928 = vmatpush1.msra.mxu0 0.0
      %929 = vmatprep.subr.mxu0 0.0
      %930 = vmatpush1.msra.mxu0 0.0
      %931 = vmatprep.subr.mxu0 0.0
      %932 = vmatpush1.msra.mxu0 0.0
      %933 = vmatprep.subr.mxu0 0.0
      %934 = vmatpush1.msra.mxu0 0.0
      %935 = vmatprep.subr.mxu0 0.0
      %936 = vmatpush1.msra.mxu0 0.0
      %937 = vmatprep.subr.mxu0 0.0
      %938 = vmatpush1.msra.mxu0 0.0
      %939 = vmatprep.subr.mxu0 0.0
      %940 = vmatpush1.msra.mxu0 0.0
      %941 = vmatprep.subr.mxu0 0.0
      %942 = vmatpush1.msra.mxu0 0.0
      %943 = vmatprep.subr.mxu0 0.0
      %944 = vmatpush1.msra.mxu0 0.0
      %945 = vmatprep.subr.mxu0 0.0
      %946 = vmatpush1.msra.mxu0 0.0
      %947 = vmatprep.subr.mxu0 0.0
      %948 = vmatpush1.msra.mxu0 0.0
      %949 = vmatprep.subr.mxu0 0.0
      %950 = vmatpush1.msra.mxu0 0.0
      %951 = vmatprep.subr.mxu0 0.0
      %952 = vmatpush1.msra.mxu0 0.0
      %953 = vmatprep.subr.mxu0 0.0
      %954 = vmatpush1.msra.mxu0 0.0
      %955 = vmatprep.subr.mxu0 0.0
      %956 = vmatpush1.msra.mxu0 0.0
      %957 = vmatprep.subr.mxu0 0.0
      %958 = vmatpush1.msra.mxu0 0.0
      %959 = vmatprep.subr.mxu0 0.0
      %960 = vmatpush1.msra.mxu0 0.0
      %961 = vmatprep.subr.mxu0 0.0
      %962 = vmatpush1.msra.mxu0 0.0
      %963 = vmatprep.subr.mxu0 0.0
      %964 = vmatpush1.msra.mxu0 0.0
      %965 = vmatprep.subr.mxu0 0.0
      %966 = vmatpush1.msra.mxu0 0.0
      %967 = vmatprep.subr.mxu0 0.0
      %968 = vmatpush1.msra.mxu0 0.0
      %969 = vmatprep.subr.mxu0 0.0
      %970 = vmatpush1.msra.mxu0 0.0
      %971 = vmatprep.subr.mxu0 0.0
      %972 = vmatpush1.msra.mxu0 0.0
      %973 = vmatprep.subr.mxu0 0.0
      %974 = vmatpush1.msra.mxu0 0.0
      %975 = vmatprep.subr.mxu0 0.0
      %976 = vmatpush1.msra.mxu0 0.0
      %977 = vmatprep.subr.mxu0 0.0
      %978 = vmatpush1.msra.mxu0 0.0
      %979 = vmatprep.subr.mxu0 0.0
      %980 = vmatpush1.msra.mxu0 0.0
      %981 = vmatprep.mubr.f32.mxu0 0.0
      %982 = vmatmul.mubr.f32.gmra.mrb[0].mxu0 %v894
      %v983 = vpop.f32.mrb[0].mxu0
      %v984 = vadd.f32 0.0, %v983
      %v985 = vpop.f32.mrb[0].mxu0
      %986 = vmatprep.mubr.f32.mxu0 0.0
      %987 = vmatmul.mubr.f32.gmra.mrb[0].mxu0 %v897
      %v988 = vpop.f32.mrb[0].mxu0
      %v989 = vadd.f32 0.0, %v988
      %v990 = vpop.f32.mrb[0].mxu0
      %991 = vmatprep.mubr.f32.mxu0 0.0
      %992 = vmatmul.mubr.f32.gmra.mrb[0].mxu0 %v900
      %v993 = vpop.f32.mrb[0].mxu0
      %v994 = vadd.f32 0.0, %v993
      %v995 = vpop.f32.mrb[0].mxu0
      %996 = vmatprep.mubr.f32.mxu0 0.0
      %997 = vmatmul.mubr.f32.gmra.mrb[0].mxu0 %v903
      %v998 = vpop.f32.mrb[0].mxu0
      %v999 = vadd.f32 0.0, %v998
      %v1000 = vpop.f32.mrb[0].mxu0
      %1001 = vmatprep.mubr.f32.mxu0 0.0
      %1002 = vmatmul.mubr.f32.gmra.mrb[0].mxu0 %v906
      %v1003 = vpop.f32.mrb[0].mxu0
      %v1004 = vadd.f32 0.0, %v1003
      %v1005 = vpop.f32.mrb[0].mxu0
      %1006 = vmatprep.mubr.f32.mxu0 0.0
      %1007 = vmatmul.mubr.f32.gmra.mrb[0].mxu0 %v909
      %v1008 = vpop.f32.mrb[0].mxu0
      %v1009 = vadd.f32 0.0, %v1008
      %v1010 = vpop.f32.mrb[0].mxu0
      %1011 = vmatprep.mubr.f32.mxu0 0.0
      %1012 = vmatmul.mubr.f32.gmra.mrb[0].mxu0 %v912
      %v1013 = vpop.f32.mrb[0].mxu0
      %v1014 = vadd.f32 0.0, %v1013
      %v1015 = vpop.f32.mrb[0].mxu0
      %1016 = vmatprep.mubr.f32.mxu0 0.0
      %1017 = vmatmul.mubr.f32.gmra.mrb[0].mxu0 %v915
      %v1018 = vpop.f32.mrb[0].mxu0
      %v1019 = vadd.f32 0.0, %v1018
      %v1020 = vpop.f32.mrb[0].mxu0
      %1021 = vdwg.mxu0
      %v1022 = vsub.f32 %v855, %v984
      %v1023 = vsub.f32 %v860, %v989
      %v1024 = vsub.f32 %v865, %v994
      %v1025 = vsub.f32 %v870, %v999
      %v1026 = vsub.f32 %v875, %v1004
      %v1027 = vsub.f32 %v880, %v1009
      %v1028 = vsub.f32 %v885, %v1014
      %v1029 = vsub.f32 %v890, %v1019
      %1030 = vmatprep.subr.mxu0 0.0
      %1031 = vmatpush1.msra.mxu0 %v759
      %1032 = vmatprep.subr.mxu0 0.0
      %1033 = vmatpush1.msra.mxu0 %v760
      %1034 = vmatprep.subr.mxu0 0.0
      %1035 = vmatpush1.msra.mxu0 0.0
      %1036 = vmatprep.subr.mxu0 0.0
      %1037 = vmatpush1.msra.mxu0 0.0
      %1038 = vmatprep.subr.mxu0 0.0
      %1039 = vmatpush1.msra.mxu0 0.0
      %1040 = vmatprep.subr.mxu0 0.0
      %1041 = vmatpush1.msra.mxu0 0.0
      %1042 = vmatprep.subr.mxu0 0.0
      %1043 = vmatpush1.msra.mxu0 0.0
      %1044 = vmatprep.subr.mxu0 0.0
      %1045 = vmatpush1.msra.mxu0 0.0
      %1046 = vmatprep.subr.mxu0 0.0
      %1047 = vmatpush1.msra.mxu0 0.0
      %1048 = vmatprep.subr.mxu0 0.0
      %1049 = vmatpush1.msra.mxu0 0.0
      %1050 = vmatprep.subr.mxu0 0.0
      %1051 = vmatpush1.msra.mxu0 0.0
      %1052 = vmatprep.subr.mxu0 0.0
      %1053 = vmatpush1.msra.mxu0 0.0
      %1054 = vmatprep.subr.mxu0 0.0
      %1055 = vmatpush1.msra.mxu0 0.0
      %1056 = vmatprep.subr.mxu0 0.0
      %1057 = vmatpush1.msra.mxu0 0.0
      %1058 = vmatprep.subr.mxu0 0.0
      %1059 = vmatpush1.msra.mxu0 0.0
      %1060 = vmatprep.subr.mxu0 0.0
      %1061 = vmatpush1.msra.mxu0 0.0
      %1062 = vmatprep.subr.mxu0 0.0
      %1063 = vmatpush1.msra.mxu0 0.0
      %1064 = vmatprep.subr.mxu0 0.0
      %1065 = vmatpush1.msra.mxu0 0.0
      %1066 = vmatprep.subr.mxu0 0.0
      %1067 = vmatpush1.msra.mxu0 0.0
      %1068 = vmatprep.subr.mxu0 0.0
      %1069 = vmatpush1.msra.mxu0 0.0
      %1070 = vmatprep.subr.mxu0 0.0
      %1071 = vmatpush1.msra.mxu0 0.0
      %1072 = vmatprep.subr.mxu0 0.0
      %1073 = vmatpush1.msra.mxu0 0.0
      %1074 = vmatprep.subr.mxu0 0.0
      %1075 = vmatpush1.msra.mxu0 0.0
      %1076 = vmatprep.subr.mxu0 0.0
      %1077 = vmatpush1.msra.mxu0 0.0
      %1078 = vmatprep.subr.mxu0 0.0
      %1079 = vmatpush1.msra.mxu0 0.0
      %1080 = vmatprep.subr.mxu0 0.0
      %1081 = vmatpush1.msra.mxu0 0.0
      %1082 = vmatprep.subr.mxu0 0.0
      %1083 = vmatpush1.msra.mxu0 0.0
      %1084 = vmatprep.subr.mxu0 0.0
      %1085 = vmatpush1.msra.mxu0 0.0
      %1086 = vmatprep.subr.mxu0 0.0
      %1087 = vmatpush1.msra.mxu0 0.0
      %1088 = vmatprep.subr.mxu0 0.0
      %1089 = vmatpush1.msra.mxu0 0.0
      %1090 = vmatprep.subr.mxu0 0.0
      %1091 = vmatpush1.msra.mxu0 0.0
      %1092 = vmatprep.subr.mxu0 0.0
      %1093 = vmatpush1.msra.mxu0 0.0
      %1094 = vmatprep.mubr.f32.mxu0 0.0
      %1095 = vmatmul.mubr.f32.gmra.mrb[0].mxu0 %v894
      %v1096 = vpop.f32.mrb[0].mxu0
      %v1097 = vadd.f32 0.0, %v1096
      %v1098 = vpop.f32.mrb[0].mxu0
      %1099 = vmatprep.mubr.f32.mxu0 0.0
      %1100 = vmatmul.mubr.f32.gmra.mrb[0].mxu0 %v897
      %v1101 = vpop.f32.mrb[0].mxu0
      %v1102 = vadd.f32 0.0, %v1101
      %v1103 = vpop.f32.mrb[0].mxu0
      %1104 = vmatprep.mubr.f32.mxu0 0.0
      %1105 = vmatmul.mubr.f32.gmra.mrb[0].mxu0 %v900
      %v1106 = vpop.f32.mrb[0].mxu0
      %v1107 = vadd.f32 0.0, %v1106
      %v1108 = vpop.f32.mrb[0].mxu0
      %1109 = vmatprep.mubr.f32.mxu0 0.0
      %1110 = vmatmul.mubr.f32.gmra.mrb[0].mxu0 %v903
      %v1111 = vpop.f32.mrb[0].mxu0
      %v1112 = vadd.f32 0.0, %v1111
      %v1113 = vpop.f32.mrb[0].mxu0
      %1114 = vmatprep.mubr.f32.mxu0 0.0
      %1115 = vmatmul.mubr.f32.gmra.mrb[0].mxu0 %v906
      %v1116 = vpop.f32.mrb[0].mxu0
      %v1117 = vadd.f32 0.0, %v1116
      %v1118 = vpop.f32.mrb[0].mxu0
      %1119 = vmatprep.mubr.f32.mxu0 0.0
      %1120 = vmatmul.mubr.f32.gmra.mrb[0].mxu0 %v909
      %v1121 = vpop.f32.mrb[0].mxu0
      %v1122 = vadd.f32 0.0, %v1121
      %v1123 = vpop.f32.mrb[0].mxu0
      %1124 = vmatprep.mubr.f32.mxu0 0.0
      %1125 = vmatmul.mubr.f32.gmra.mrb[0].mxu0 %v912
      %v1126 = vpop.f32.mrb[0].mxu0
      %v1127 = vadd.f32 0.0, %v1126
      %v1128 = vpop.f32.mrb[0].mxu0
      %1129 = vmatprep.mubr.f32.mxu0 0.0
      %1130 = vmatmul.mubr.f32.gmra.mrb[0].mxu0 %v915
      %v1131 = vpop.f32.mrb[0].mxu0
      %v1132 = vadd.f32 0.0, %v1131
      %v1133 = vpop.f32.mrb[0].mxu0
      %1134 = vdwg.mxu0
      %1135 = vmatprep.subr.mxu0 0.0
      %1136 = vmatpush1.msra.mxu0 %v762
      %1137 = vmatprep.subr.mxu0 0.0
      %1138 = vmatpush1.msra.mxu0 %v763
      %1139 = vmatprep.subr.mxu0 0.0
      %1140 = vmatpush1.msra.mxu0 0.0
      %1141 = vmatprep.subr.mxu0 0.0
      %1142 = vmatpush1.msra.mxu0 0.0
      %1143 = vmatprep.subr.mxu0 0.0
      %1144 = vmatpush1.msra.mxu0 0.0
      %1145 = vmatprep.subr.mxu0 0.0
      %1146 = vmatpush1.msra.mxu0 0.0
      %1147 = vmatprep.subr.mxu0 0.0
      %1148 = vmatpush1.msra.mxu0 0.0
      %1149 = vmatprep.subr.mxu0 0.0
      %1150 = vmatpush1.msra.mxu0 0.0
      %1151 = vmatprep.subr.mxu0 0.0
      %1152 = vmatpush1.msra.mxu0 0.0
      %1153 = vmatprep.subr.mxu0 0.0
      %1154 = vmatpush1.msra.mxu0 0.0
      %1155 = vmatprep.subr.mxu0 0.0
      %1156 = vmatpush1.msra.mxu0 0.0
      %1157 = vmatprep.subr.mxu0 0.0
      %1158 = vmatpush1.msra.mxu0 0.0
      %1159 = vmatprep.subr.mxu0 0.0
      %1160 = vmatpush1.msra.mxu0 0.0
      %1161 = vmatprep.subr.mxu0 0.0
      %1162 = vmatpush1.msra.mxu0 0.0
      %1163 = vmatprep.subr.mxu0 0.0
      %1164 = vmatpush1.msra.mxu0 0.0
      %1165 = vmatprep.subr.mxu0 0.0
      %1166 = vmatpush1.msra.mxu0 0.0
      %1167 = vmatprep.subr.mxu0 0.0
      %1168 = vmatpush1.msra.mxu0 0.0
      %1169 = vmatprep.subr.mxu0 0.0
      %1170 = vmatpush1.msra.mxu0 0.0
      %1171 = vmatprep.subr.mxu0 0.0
      %1172 = vmatpush1.msra.mxu0 0.0
      %1173 = vmatprep.subr.mxu0 0.0
      %1174 = vmatpush1.msra.mxu0 0.0
      %1175 = vmatprep.subr.mxu0 0.0
      %1176 = vmatpush1.msra.mxu0 0.0
      %1177 = vmatprep.subr.mxu0 0.0
      %1178 = vmatpush1.msra.mxu0 0.0
      %1179 = vmatprep.subr.mxu0 0.0
      %1180 = vmatpush1.msra.mxu0 0.0
      %1181 = vmatprep.subr.mxu0 0.0
      %1182 = vmatpush1.msra.mxu0 0.0
      %1183 = vmatprep.subr.mxu0 0.0
      %1184 = vmatpush1.msra.mxu0 0.0
      %1185 = vmatprep.subr.mxu0 0.0
      %1186 = vmatpush1.msra.mxu0 0.0
      %1187 = vmatprep.subr.mxu0 0.0
      %1188 = vmatpush1.msra.mxu0 0.0
      %1189 = vmatprep.subr.mxu0 0.0
      %1190 = vmatpush1.msra.mxu0 0.0
      %1191 = vmatprep.subr.mxu0 0.0
      %1192 = vmatpush1.msra.mxu0 0.0
      %1193 = vmatprep.subr.mxu0 0.0
      %1194 = vmatpush1.msra.mxu0 0.0
      %1195 = vmatprep.subr.mxu0 0.0
      %1196 = vmatpush1.msra.mxu0 0.0
      %1197 = vmatprep.subr.mxu0 0.0
      %1198 = vmatpush1.msra.mxu0 0.0
      %1199 = vmatprep.mubr.f32.mxu0 0.0
      %1200 = vmatmul.mubr.f32.gmra.mrb[0].mxu0 %v765
      %v1201 = vpop.f32.mrb[0].mxu0
      %v1202 = vadd.f32 %v1097, %v1201
      %v1203 = vpop.f32.mrb[0].mxu0
      %1204 = vmatprep.mubr.f32.mxu0 0.0
      %1205 = vmatmul.mubr.f32.gmra.mrb[0].mxu0 %v768
      %v1206 = vpop.f32.mrb[0].mxu0
      %v1207 = vadd.f32 %v1102, %v1206
      %v1208 = vpop.f32.mrb[0].mxu0
      %1209 = vmatprep.mubr.f32.mxu0 0.0
      %1210 = vmatmul.mubr.f32.gmra.mrb[0].mxu0 %v771
      %v1211 = vpop.f32.mrb[0].mxu0
      %v1212 = vadd.f32 %v1107, %v1211
      %v1213 = vpop.f32.mrb[0].mxu0
      %1214 = vmatprep.mubr.f32.mxu0 0.0
      %1215 = vmatmul.mubr.f32.gmra.mrb[0].mxu0 %v774
      %v1216 = vpop.f32.mrb[0].mxu0
      %v1217 = vadd.f32 %v1112, %v1216
      %v1218 = vpop.f32.mrb[0].mxu0
      %1219 = vmatprep.mubr.f32.mxu0 0.0
      %1220 = vmatmul.mubr.f32.gmra.mrb[0].mxu0 %v777
      %v1221 = vpop.f32.mrb[0].mxu0
      %v1222 = vadd.f32 %v1117, %v1221
      %v1223 = vpop.f32.mrb[0].mxu0
      %1224 = vmatprep.mubr.f32.mxu0 0.0
      %1225 = vmatmul.mubr.f32.gmra.mrb[0].mxu0 %v780
      %v1226 = vpop.f32.mrb[0].mxu0
      %v1227 = vadd.f32 %v1122, %v1226
      %v1228 = vpop.f32.mrb[0].mxu0
      %1229 = vmatprep.mubr.f32.mxu0 0.0
      %1230 = vmatmul.mubr.f32.gmra.mrb[0].mxu0 %v783
      %v1231 = vpop.f32.mrb[0].mxu0
      %v1232 = vadd.f32 %v1127, %v1231
      %v1233 = vpop.f32.mrb[0].mxu0
      %1234 = vmatprep.mubr.f32.mxu0 0.0
      %1235 = vmatmul.mubr.f32.gmra.mrb[0].mxu0 %v786
      %v1236 = vpop.f32.mrb[0].mxu0
      %v1237 = vadd.f32 %v1132, %v1236
      %v1238 = vpop.f32.mrb[0].mxu0
      %1239 = vdwg.mxu0
      %v1240 = vld [vmem:[%s5] sm:$0xff]
      %v1241 = vld [vmem:[%s5 + $0x8] sm:$0xff]
      %v1242 = vld [vmem:[%s5 + $0x10] sm:$0xff]
      %v1243 = vld [vmem:[%s5 + $0x18] sm:$0xff]
      %v1244 = vld [vmem:[%s5 + $0x20] sm:$0xff]
      %v1245 = vld [vmem:[%s5 + $0x28] sm:$0xff]
      %v1246 = vld [vmem:[%s5 + $0x30] sm:$0xff]
      %v1247 = vld [vmem:[%s5 + $0x38] sm:$0xff]
      %s1248 = scalar_lea.vmem %s5, 64
      %v1249 = vld [vmem:[%s1248] sm:$0xff]
      %v1250 = vld [vmem:[%s1248 + $0x8] sm:$0xff]
      %v1251 = vld [vmem:[%s1248 + $0x10] sm:$0xff]
      %v1252 = vld [vmem:[%s1248 + $0x18] sm:$0xff]
      %v1253 = vld [vmem:[%s1248 + $0x20] sm:$0xff]
      %v1254 = vld [vmem:[%s1248 + $0x28] sm:$0xff]
      %v1255 = vld [vmem:[%s1248 + $0x30] sm:$0xff]
      %v1256 = vld [vmem:[%s1248 + $0x38] sm:$0xff]
      %v1257 = vmul.f32 %v1022, %v1240
      %v1258 = vmul.f32 %v1023, %v1241
      %v1259 = vmul.f32 %v1024, %v1242
      %v1260 = vmul.f32 %v1025, %v1243
      %v1261 = vmul.f32 %v1026, %v1244
      %v1262 = vmul.f32 %v1027, %v1245
      %v1263 = vmul.f32 %v1028, %v1246
      %v1264 = vmul.f32 %v1029, %v1247
      %v1265 = vmul.f32 %v1202, %v1249
      %v1266 = vmul.f32 %v1207, %v1250
      %v1267 = vmul.f32 %v1212, %v1251
      %v1268 = vmul.f32 %v1217, %v1252
      %v1269 = vmul.f32 %v1222, %v1253
      %v1270 = vmul.f32 %v1227, %v1254
      %v1271 = vmul.f32 %v1232, %v1255
      %v1272 = vmul.f32 %v1237, %v1256
      %v1273 = vsub.f32 %v1257, %v1265
      %v1274 = vsub.f32 %v1258, %v1266
      %v1275 = vsub.f32 %v1259, %v1267
      %v1276 = vsub.f32 %v1260, %v1268
      %v1277 = vsub.f32 %v1261, %v1269
      %v1278 = vsub.f32 %v1262, %v1270
      %v1279 = vsub.f32 %v1263, %v1271
      %v1280 = vsub.f32 %v1264, %v1272
      %v1281 = vmul.f32 %v1022, %v1249
      %v1282 = vmul.f32 %v1023, %v1250
      %v1283 = vmul.f32 %v1024, %v1251
      %v1284 = vmul.f32 %v1025, %v1252
      %v1285 = vmul.f32 %v1026, %v1253
      %v1286 = vmul.f32 %v1027, %v1254
      %v1287 = vmul.f32 %v1028, %v1255
      %v1288 = vmul.f32 %v1029, %v1256
      %v1289 = vmul.f32 %v1202, %v1240
      %v1290 = vmul.f32 %v1207, %v1241
      %v1291 = vmul.f32 %v1212, %v1242
      %v1292 = vmul.f32 %v1217, %v1243
      %v1293 = vmul.f32 %v1222, %v1244
      %v1294 = vmul.f32 %v1227, %v1245
      %v1295 = vmul.f32 %v1232, %v1246
      %v1296 = vmul.f32 %v1237, %v1247
      %v1297 = vadd.f32 %v1281, %v1289
      %v1298 = vadd.f32 %v1282, %v1290
      %v1299 = vadd.f32 %v1283, %v1291
      %v1300 = vadd.f32 %v1284, %v1292
      %v1301 = vadd.f32 %v1285, %v1293
      %v1302 = vadd.f32 %v1286, %v1294
      %v1303 = vadd.f32 %v1287, %v1295
      %v1304 = vadd.f32 %v1288, %v1296
      %v1305 = vld [vmem:[%s3] sm:$0xff]
      %v1306 = vld [vmem:[%s3 + $0x8] sm:$0xff]
      %s1307 = scalar_lea.vmem %s3, 16
      %v1308 = vld [vmem:[%s1307] sm:$0xff]
      %v1309 = vld [vmem:[%s1307 + $0x8] sm:$0xff]
      %v1311 = vsel %vm265, %v1273, 0
      %v1314 = vsel %vm265, %v1274, 0
      %v1317 = vsel %vm265, %v1275, 0
      %v1320 = vsel %vm265, %v1276, 0
      %v1323 = vsel %vm265, %v1277, 0
      %v1326 = vsel %vm265, %v1278, 0
      %v1329 = vsel %vm265, %v1279, 0
      %v1332 = vsel %vm265, %v1280, 0
      %1334 = vmatprep.subr.mxu0 0.0
      %1335 = vmatpush1.msra.mxu0 %v1305
      %1336 = vmatprep.subr.mxu0 0.0
      %1337 = vmatpush1.msra.mxu0 %v1306
      %1338 = vmatprep.subr.mxu0 0.0
      %1339 = vmatpush1.msra.mxu0 0.0
      %1340 = vmatprep.subr.mxu0 0.0
      %1341 = vmatpush1.msra.mxu0 0.0
      %1342 = vmatprep.subr.mxu0 0.0
      %1343 = vmatpush1.msra.mxu0 0.0
      %1344 = vmatprep.subr.mxu0 0.0
      %1345 = vmatpush1.msra.mxu0 0.0
      %1346 = vmatprep.subr.mxu0 0.0
      %1347 = vmatpush1.msra.mxu0 0.0
      %1348 = vmatprep.subr.mxu0 0.0
      %1349 = vmatpush1.msra.mxu0 0.0
      %1350 = vmatprep.subr.mxu0 0.0
      %1351 = vmatpush1.msra.mxu0 0.0
      %1352 = vmatprep.subr.mxu0 0.0
      %1353 = vmatpush1.msra.mxu0 0.0
      %1354 = vmatprep.subr.mxu0 0.0
      %1355 = vmatpush1.msra.mxu0 0.0
      %1356 = vmatprep.subr.mxu0 0.0
      %1357 = vmatpush1.msra.mxu0 0.0
      %1358 = vmatprep.subr.mxu0 0.0
      %1359 = vmatpush1.msra.mxu0 0.0
      %1360 = vmatprep.subr.mxu0 0.0
      %1361 = vmatpush1.msra.mxu0 0.0
      %1362 = vmatprep.subr.mxu0 0.0
      %1363 = vmatpush1.msra.mxu0 0.0
      %1364 = vmatprep.subr.mxu0 0.0
      %1365 = vmatpush1.msra.mxu0 0.0
      %1366 = vmatprep.subr.mxu0 0.0
      %1367 = vmatpush1.msra.mxu0 0.0
      %1368 = vmatprep.subr.mxu0 0.0
      %1369 = vmatpush1.msra.mxu0 0.0
      %1370 = vmatprep.subr.mxu0 0.0
      %1371 = vmatpush1.msra.mxu0 0.0
      %1372 = vmatprep.subr.mxu0 0.0
      %1373 = vmatpush1.msra.mxu0 0.0
      %1374 = vmatprep.subr.mxu0 0.0
      %1375 = vmatpush1.msra.mxu0 0.0
      %1376 = vmatprep.subr.mxu0 0.0
      %1377 = vmatpush1.msra.mxu0 0.0
      %1378 = vmatprep.subr.mxu0 0.0
      %1379 = vmatpush1.msra.mxu0 0.0
      %1380 = vmatprep.subr.mxu0 0.0
      %1381 = vmatpush1.msra.mxu0 0.0
      %1382 = vmatprep.subr.mxu0 0.0
      %1383 = vmatpush1.msra.mxu0 0.0
      %1384 = vmatprep.subr.mxu0 0.0
      %1385 = vmatpush1.msra.mxu0 0.0
      %1386 = vmatprep.subr.mxu0 0.0
      %1387 = vmatpush1.msra.mxu0 0.0
      %1388 = vmatprep.subr.mxu0 0.0
      %1389 = vmatpush1.msra.mxu0 0.0
      %1390 = vmatprep.subr.mxu0 0.0
      %1391 = vmatpush1.msra.mxu0 0.0
      %1392 = vmatprep.subr.mxu0 0.0
      %1393 = vmatpush1.msra.mxu0 0.0
      %1394 = vmatprep.subr.mxu0 0.0
      %1395 = vmatpush1.msra.mxu0 0.0
      %1396 = vmatprep.subr.mxu0 0.0
      %1397 = vmatpush1.msra.mxu0 0.0
      %1398 = vmatprep.mubr.f32.mxu0 0.0
      %1399 = vmatmul.mubr.f32.gmra.mrb[0].mxu0 %v1311
      %v1400 = vpop.f32.mrb[0].mxu0
      %v1401 = vadd.f32 0.0, %v1400
      %v1402 = vpop.f32.mrb[0].mxu0
      %1403 = vmatprep.mubr.f32.mxu0 0.0
      %1404 = vmatmul.mubr.f32.gmra.mrb[0].mxu0 %v1314
      %v1405 = vpop.f32.mrb[0].mxu0
      %v1406 = vadd.f32 0.0, %v1405
      %v1407 = vpop.f32.mrb[0].mxu0
      %1408 = vmatprep.mubr.f32.mxu0 0.0
      %1409 = vmatmul.mubr.f32.gmra.mrb[0].mxu0 %v1317
      %v1410 = vpop.f32.mrb[0].mxu0
      %v1411 = vadd.f32 0.0, %v1410
      %v1412 = vpop.f32.mrb[0].mxu0
      %1413 = vmatprep.mubr.f32.mxu0 0.0
      %1414 = vmatmul.mubr.f32.gmra.mrb[0].mxu0 %v1320
      %v1415 = vpop.f32.mrb[0].mxu0
      %v1416 = vadd.f32 0.0, %v1415
      %v1417 = vpop.f32.mrb[0].mxu0
      %1418 = vmatprep.mubr.f32.mxu0 0.0
      %1419 = vmatmul.mubr.f32.gmra.mrb[0].mxu0 %v1323
      %v1420 = vpop.f32.mrb[0].mxu0
      %v1421 = vadd.f32 0.0, %v1420
      %v1422 = vpop.f32.mrb[0].mxu0
      %1423 = vmatprep.mubr.f32.mxu0 0.0
      %1424 = vmatmul.mubr.f32.gmra.mrb[0].mxu0 %v1326
      %v1425 = vpop.f32.mrb[0].mxu0
      %v1426 = vadd.f32 0.0, %v1425
      %v1427 = vpop.f32.mrb[0].mxu0
      %1428 = vmatprep.mubr.f32.mxu0 0.0
      %1429 = vmatmul.mubr.f32.gmra.mrb[0].mxu0 %v1329
      %v1430 = vpop.f32.mrb[0].mxu0
      %v1431 = vadd.f32 0.0, %v1430
      %v1432 = vpop.f32.mrb[0].mxu0
      %1433 = vmatprep.mubr.f32.mxu0 0.0
      %1434 = vmatmul.mubr.f32.gmra.mrb[0].mxu0 %v1332
      %v1435 = vpop.f32.mrb[0].mxu0
      %v1436 = vadd.f32 0.0, %v1435
      %v1437 = vpop.f32.mrb[0].mxu0
      %1438 = vdwg.mxu0
      %v1440 = vsel %vm265, %v1297, 0
      %v1443 = vsel %vm265, %v1298, 0
      %v1446 = vsel %vm265, %v1299, 0
      %v1449 = vsel %vm265, %v1300, 0
      %v1452 = vsel %vm265, %v1301, 0
      %v1455 = vsel %vm265, %v1302, 0
      %v1458 = vsel %vm265, %v1303, 0
      %v1461 = vsel %vm265, %v1304, 0
      %1463 = vmatprep.subr.mxu0 0.0
      %1464 = vmatpush1.msra.mxu0 %v1308
      %1465 = vmatprep.subr.mxu0 0.0
      %1466 = vmatpush1.msra.mxu0 %v1309
      %1467 = vmatprep.subr.mxu0 0.0
      %1468 = vmatpush1.msra.mxu0 0.0
      %1469 = vmatprep.subr.mxu0 0.0
      %1470 = vmatpush1.msra.mxu0 0.0
      %1471 = vmatprep.subr.mxu0 0.0
      %1472 = vmatpush1.msra.mxu0 0.0
      %1473 = vmatprep.subr.mxu0 0.0
      %1474 = vmatpush1.msra.mxu0 0.0
      %1475 = vmatprep.subr.mxu0 0.0
      %1476 = vmatpush1.msra.mxu0 0.0
      %1477 = vmatprep.subr.mxu0 0.0
      %1478 = vmatpush1.msra.mxu0 0.0
      %1479 = vmatprep.subr.mxu0 0.0
      %1480 = vmatpush1.msra.mxu0 0.0
      %1481 = vmatprep.subr.mxu0 0.0
      %1482 = vmatpush1.msra.mxu0 0.0
      %1483 = vmatprep.subr.mxu0 0.0
      %1484 = vmatpush1.msra.mxu0 0.0
      %1485 = vmatprep.subr.mxu0 0.0
      %1486 = vmatpush1.msra.mxu0 0.0
      %1487 = vmatprep.subr.mxu0 0.0
      %1488 = vmatpush1.msra.mxu0 0.0
      %1489 = vmatprep.subr.mxu0 0.0
      %1490 = vmatpush1.msra.mxu0 0.0
      %1491 = vmatprep.subr.mxu0 0.0
      %1492 = vmatpush1.msra.mxu0 0.0
      %1493 = vmatprep.subr.mxu0 0.0
      %1494 = vmatpush1.msra.mxu0 0.0
      %1495 = vmatprep.subr.mxu0 0.0
      %1496 = vmatpush1.msra.mxu0 0.0
      %1497 = vmatprep.subr.mxu0 0.0
      %1498 = vmatpush1.msra.mxu0 0.0
      %1499 = vmatprep.subr.mxu0 0.0
      %1500 = vmatpush1.msra.mxu0 0.0
      %1501 = vmatprep.subr.mxu0 0.0
      %1502 = vmatpush1.msra.mxu0 0.0
      %1503 = vmatprep.subr.mxu0 0.0
      %1504 = vmatpush1.msra.mxu0 0.0
      %1505 = vmatprep.subr.mxu0 0.0
      %1506 = vmatpush1.msra.mxu0 0.0
      %1507 = vmatprep.subr.mxu0 0.0
      %1508 = vmatpush1.msra.mxu0 0.0
      %1509 = vmatprep.subr.mxu0 0.0
      %1510 = vmatpush1.msra.mxu0 0.0
      %1511 = vmatprep.subr.mxu0 0.0
      %1512 = vmatpush1.msra.mxu0 0.0
      %1513 = vmatprep.subr.mxu0 0.0
      %1514 = vmatpush1.msra.mxu0 0.0
      %1515 = vmatprep.subr.mxu0 0.0
      %1516 = vmatpush1.msra.mxu0 0.0
      %1517 = vmatprep.subr.mxu0 0.0
      %1518 = vmatpush1.msra.mxu0 0.0
      %1519 = vmatprep.subr.mxu0 0.0
      %1520 = vmatpush1.msra.mxu0 0.0
      %1521 = vmatprep.subr.mxu0 0.0
      %1522 = vmatpush1.msra.mxu0 0.0
      %1523 = vmatprep.subr.mxu0 0.0
      %1524 = vmatpush1.msra.mxu0 0.0
      %1525 = vmatprep.subr.mxu0 0.0
      %1526 = vmatpush1.msra.mxu0 0.0
      %1527 = vmatprep.mubr.f32.mxu0 0.0
      %1528 = vmatmul.mubr.f32.gmra.mrb[0].mxu0 %v1440
      %v1529 = vpop.f32.mrb[0].mxu0
      %v1530 = vadd.f32 0.0, %v1529
      %v1531 = vpop.f32.mrb[0].mxu0
      %1532 = vmatprep.mubr.f32.mxu0 0.0
      %1533 = vmatmul.mubr.f32.gmra.mrb[0].mxu0 %v1443
      %v1534 = vpop.f32.mrb[0].mxu0
      %v1535 = vadd.f32 0.0, %v1534
      %v1536 = vpop.f32.mrb[0].mxu0
      %1537 = vmatprep.mubr.f32.mxu0 0.0
      %1538 = vmatmul.mubr.f32.gmra.mrb[0].mxu0 %v1446
      %v1539 = vpop.f32.mrb[0].mxu0
      %v1540 = vadd.f32 0.0, %v1539
      %v1541 = vpop.f32.mrb[0].mxu0
      %1542 = vmatprep.mubr.f32.mxu0 0.0
      %1543 = vmatmul.mubr.f32.gmra.mrb[0].mxu0 %v1449
      %v1544 = vpop.f32.mrb[0].mxu0
      %v1545 = vadd.f32 0.0, %v1544
      %v1546 = vpop.f32.mrb[0].mxu0
      %1547 = vmatprep.mubr.f32.mxu0 0.0
      %1548 = vmatmul.mubr.f32.gmra.mrb[0].mxu0 %v1452
      %v1549 = vpop.f32.mrb[0].mxu0
      %v1550 = vadd.f32 0.0, %v1549
      %v1551 = vpop.f32.mrb[0].mxu0
      %1552 = vmatprep.mubr.f32.mxu0 0.0
      %1553 = vmatmul.mubr.f32.gmra.mrb[0].mxu0 %v1455
      %v1554 = vpop.f32.mrb[0].mxu0
      %v1555 = vadd.f32 0.0, %v1554
      %v1556 = vpop.f32.mrb[0].mxu0
      %1557 = vmatprep.mubr.f32.mxu0 0.0
      %1558 = vmatmul.mubr.f32.gmra.mrb[0].mxu0 %v1458
      %v1559 = vpop.f32.mrb[0].mxu0
      %v1560 = vadd.f32 0.0, %v1559
      %v1561 = vpop.f32.mrb[0].mxu0
      %1562 = vmatprep.mubr.f32.mxu0 0.0
      %1563 = vmatmul.mubr.f32.gmra.mrb[0].mxu0 %v1461
      %v1564 = vpop.f32.mrb[0].mxu0
      %v1565 = vadd.f32 0.0, %v1564
      %v1566 = vpop.f32.mrb[0].mxu0
      %1567 = vdwg.mxu0
      %v1568 = vsub.f32 %v1401, %v1530
      %v1569 = vsub.f32 %v1406, %v1535
      %v1570 = vsub.f32 %v1411, %v1540
      %v1571 = vsub.f32 %v1416, %v1545
      %v1572 = vsub.f32 %v1421, %v1550
      %v1573 = vsub.f32 %v1426, %v1555
      %v1574 = vsub.f32 %v1431, %v1560
      %v1575 = vsub.f32 %v1436, %v1565
      %1576 = vmatprep.subr.mxu0 0.0
      %1577 = vmatpush1.msra.mxu0 %v1305
      %1578 = vmatprep.subr.mxu0 0.0
      %1579 = vmatpush1.msra.mxu0 %v1306
      %1580 = vmatprep.subr.mxu0 0.0
      %1581 = vmatpush1.msra.mxu0 0.0
      %1582 = vmatprep.subr.mxu0 0.0
      %1583 = vmatpush1.msra.mxu0 0.0
      %1584 = vmatprep.subr.mxu0 0.0
      %1585 = vmatpush1.msra.mxu0 0.0
      %1586 = vmatprep.subr.mxu0 0.0
      %1587 = vmatpush1.msra.mxu0 0.0
      %1588 = vmatprep.subr.mxu0 0.0
      %1589 = vmatpush1.msra.mxu0 0.0
      %1590 = vmatprep.subr.mxu0 0.0
      %1591 = vmatpush1.msra.mxu0 0.0
      %1592 = vmatprep.subr.mxu0 0.0
      %1593 = vmatpush1.msra.mxu0 0.0
      %1594 = vmatprep.subr.mxu0 0.0
      %1595 = vmatpush1.msra.mxu0 0.0
      %1596 = vmatprep.subr.mxu0 0.0
      %1597 = vmatpush1.msra.mxu0 0.0
      %1598 = vmatprep.subr.mxu0 0.0
      %1599 = vmatpush1.msra.mxu0 0.0
      %1600 = vmatprep.subr.mxu0 0.0
      %1601 = vmatpush1.msra.mxu0 0.0
      %1602 = vmatprep.subr.mxu0 0.0
      %1603 = vmatpush1.msra.mxu0 0.0
      %1604 = vmatprep.subr.mxu0 0.0
      %1605 = vmatpush1.msra.mxu0 0.0
      %1606 = vmatprep.subr.mxu0 0.0
      %1607 = vmatpush1.msra.mxu0 0.0
      %1608 = vmatprep.subr.mxu0 0.0
      %1609 = vmatpush1.msra.mxu0 0.0
      %1610 = vmatprep.subr.mxu0 0.0
      %1611 = vmatpush1.msra.mxu0 0.0
      %1612 = vmatprep.subr.mxu0 0.0
      %1613 = vmatpush1.msra.mxu0 0.0
      %1614 = vmatprep.subr.mxu0 0.0
      %1615 = vmatpush1.msra.mxu0 0.0
      %1616 = vmatprep.subr.mxu0 0.0
      %1617 = vmatpush1.msra.mxu0 0.0
      %1618 = vmatprep.subr.mxu0 0.0
      %1619 = vmatpush1.msra.mxu0 0.0
      %1620 = vmatprep.subr.mxu0 0.0
      %1621 = vmatpush1.msra.mxu0 0.0
      %1622 = vmatprep.subr.mxu0 0.0
      %1623 = vmatpush1.msra.mxu0 0.0
      %1624 = vmatprep.subr.mxu0 0.0
      %1625 = vmatpush1.msra.mxu0 0.0
      %1626 = vmatprep.subr.mxu0 0.0
      %1627 = vmatpush1.msra.mxu0 0.0
      %1628 = vmatprep.subr.mxu0 0.0
      %1629 = vmatpush1.msra.mxu0 0.0
      %1630 = vmatprep.subr.mxu0 0.0
      %1631 = vmatpush1.msra.mxu0 0.0
      %1632 = vmatprep.subr.mxu0 0.0
      %1633 = vmatpush1.msra.mxu0 0.0
      %1634 = vmatprep.subr.mxu0 0.0
      %1635 = vmatpush1.msra.mxu0 0.0
      %1636 = vmatprep.subr.mxu0 0.0
      %1637 = vmatpush1.msra.mxu0 0.0
      %1638 = vmatprep.subr.mxu0 0.0
      %1639 = vmatpush1.msra.mxu0 0.0
      %1640 = vmatprep.mubr.f32.mxu0 0.0
      %1641 = vmatmul.mubr.f32.gmra.mrb[0].mxu0 %v1440
      %v1642 = vpop.f32.mrb[0].mxu0
      %v1643 = vadd.f32 0.0, %v1642
      %v1644 = vpop.f32.mrb[0].mxu0
      %1645 = vmatprep.mubr.f32.mxu0 0.0
      %1646 = vmatmul.mubr.f32.gmra.mrb[0].mxu0 %v1443
      %v1647 = vpop.f32.mrb[0].mxu0
      %v1648 = vadd.f32 0.0, %v1647
      %v1649 = vpop.f32.mrb[0].mxu0
      %1650 = vmatprep.mubr.f32.mxu0 0.0
      %1651 = vmatmul.mubr.f32.gmra.mrb[0].mxu0 %v1446
      %v1652 = vpop.f32.mrb[0].mxu0
      %v1653 = vadd.f32 0.0, %v1652
      %v1654 = vpop.f32.mrb[0].mxu0
      %1655 = vmatprep.mubr.f32.mxu0 0.0
      %1656 = vmatmul.mubr.f32.gmra.mrb[0].mxu0 %v1449
      %v1657 = vpop.f32.mrb[0].mxu0
      %v1658 = vadd.f32 0.0, %v1657
      %v1659 = vpop.f32.mrb[0].mxu0
      %1660 = vmatprep.mubr.f32.mxu0 0.0
      %1661 = vmatmul.mubr.f32.gmra.mrb[0].mxu0 %v1452
      %v1662 = vpop.f32.mrb[0].mxu0
      %v1663 = vadd.f32 0.0, %v1662
      %v1664 = vpop.f32.mrb[0].mxu0
      %1665 = vmatprep.mubr.f32.mxu0 0.0
      %1666 = vmatmul.mubr.f32.gmra.mrb[0].mxu0 %v1455
      %v1667 = vpop.f32.mrb[0].mxu0
      %v1668 = vadd.f32 0.0, %v1667
      %v1669 = vpop.f32.mrb[0].mxu0
      %1670 = vmatprep.mubr.f32.mxu0 0.0
      %1671 = vmatmul.mubr.f32.gmra.mrb[0].mxu0 %v1458
      %v1672 = vpop.f32.mrb[0].mxu0
      %v1673 = vadd.f32 0.0, %v1672
      %v1674 = vpop.f32.mrb[0].mxu0
      %1675 = vmatprep.mubr.f32.mxu0 0.0
      %1676 = vmatmul.mubr.f32.gmra.mrb[0].mxu0 %v1461
      %v1677 = vpop.f32.mrb[0].mxu0
      %v1678 = vadd.f32 0.0, %v1677
      %v1679 = vpop.f32.mrb[0].mxu0
      %1680 = vdwg.mxu0
      %1681 = vmatprep.subr.mxu0 0.0
      %1682 = vmatpush1.msra.mxu0 %v1308
      %1683 = vmatprep.subr.mxu0 0.0
      %1684 = vmatpush1.msra.mxu0 %v1309
      %1685 = vmatprep.subr.mxu0 0.0
      %1686 = vmatpush1.msra.mxu0 0.0
      %1687 = vmatprep.subr.mxu0 0.0
      %1688 = vmatpush1.msra.mxu0 0.0
      %1689 = vmatprep.subr.mxu0 0.0
      %1690 = vmatpush1.msra.mxu0 0.0
      %1691 = vmatprep.subr.mxu0 0.0
      %1692 = vmatpush1.msra.mxu0 0.0
      %1693 = vmatprep.subr.mxu0 0.0
      %1694 = vmatpush1.msra.mxu0 0.0
      %1695 = vmatprep.subr.mxu0 0.0
      %1696 = vmatpush1.msra.mxu0 0.0
      %1697 = vmatprep.subr.mxu0 0.0
      %1698 = vmatpush1.msra.mxu0 0.0
      %1699 = vmatprep.subr.mxu0 0.0
      %1700 = vmatpush1.msra.mxu0 0.0
      %1701 = vmatprep.subr.mxu0 0.0
      %1702 = vmatpush1.msra.mxu0 0.0
      %1703 = vmatprep.subr.mxu0 0.0
      %1704 = vmatpush1.msra.mxu0 0.0
      %1705 = vmatprep.subr.mxu0 0.0
      %1706 = vmatpush1.msra.mxu0 0.0
      %1707 = vmatprep.subr.mxu0 0.0
      %1708 = vmatpush1.msra.mxu0 0.0
      %1709 = vmatprep.subr.mxu0 0.0
      %1710 = vmatpush1.msra.mxu0 0.0
      %1711 = vmatprep.subr.mxu0 0.0
      %1712 = vmatpush1.msra.mxu0 0.0
      %1713 = vmatprep.subr.mxu0 0.0
      %1714 = vmatpush1.msra.mxu0 0.0
      %1715 = vmatprep.subr.mxu0 0.0
      %1716 = vmatpush1.msra.mxu0 0.0
      %1717 = vmatprep.subr.mxu0 0.0
      %1718 = vmatpush1.msra.mxu0 0.0
      %1719 = vmatprep.subr.mxu0 0.0
      %1720 = vmatpush1.msra.mxu0 0.0
      %1721 = vmatprep.subr.mxu0 0.0
      %1722 = vmatpush1.msra.mxu0 0.0
      %1723 = vmatprep.subr.mxu0 0.0
      %1724 = vmatpush1.msra.mxu0 0.0
      %1725 = vmatprep.subr.mxu0 0.0
      %1726 = vmatpush1.msra.mxu0 0.0
      %1727 = vmatprep.subr.mxu0 0.0
      %1728 = vmatpush1.msra.mxu0 0.0
      %1729 = vmatprep.subr.mxu0 0.0
      %1730 = vmatpush1.msra.mxu0 0.0
      %1731 = vmatprep.subr.mxu0 0.0
      %1732 = vmatpush1.msra.mxu0 0.0
      %1733 = vmatprep.subr.mxu0 0.0
      %1734 = vmatpush1.msra.mxu0 0.0
      %1735 = vmatprep.subr.mxu0 0.0
      %1736 = vmatpush1.msra.mxu0 0.0
      %1737 = vmatprep.subr.mxu0 0.0
      %1738 = vmatpush1.msra.mxu0 0.0
      %1739 = vmatprep.subr.mxu0 0.0
      %1740 = vmatpush1.msra.mxu0 0.0
      %1741 = vmatprep.subr.mxu0 0.0
      %1742 = vmatpush1.msra.mxu0 0.0
      %1743 = vmatprep.subr.mxu0 0.0
      %1744 = vmatpush1.msra.mxu0 0.0
      %1745 = vmatprep.mubr.f32.mxu0 0.0
      %1746 = vmatmul.mubr.f32.gmra.mrb[0].mxu0 %v1311
      %v1747 = vpop.f32.mrb[0].mxu0
      %v1748 = vadd.f32 %v1643, %v1747
      %v1749 = vpop.f32.mrb[0].mxu0
      %1750 = vmatprep.mubr.f32.mxu0 0.0
      %1751 = vmatmul.mubr.f32.gmra.mrb[0].mxu0 %v1314
      %v1752 = vpop.f32.mrb[0].mxu0
      %v1753 = vadd.f32 %v1648, %v1752
      %v1754 = vpop.f32.mrb[0].mxu0
      %1755 = vmatprep.mubr.f32.mxu0 0.0
      %1756 = vmatmul.mubr.f32.gmra.mrb[0].mxu0 %v1317
      %v1757 = vpop.f32.mrb[0].mxu0
      %v1758 = vadd.f32 %v1653, %v1757
      %v1759 = vpop.f32.mrb[0].mxu0
      %1760 = vmatprep.mubr.f32.mxu0 0.0
      %1761 = vmatmul.mubr.f32.gmra.mrb[0].mxu0 %v1320
      %v1762 = vpop.f32.mrb[0].mxu0
      %v1763 = vadd.f32 %v1658, %v1762
      %v1764 = vpop.f32.mrb[0].mxu0
      %1765 = vmatprep.mubr.f32.mxu0 0.0
      %1766 = vmatmul.mubr.f32.gmra.mrb[0].mxu0 %v1323
      %v1767 = vpop.f32.mrb[0].mxu0
      %v1768 = vadd.f32 %v1663, %v1767
      %v1769 = vpop.f32.mrb[0].mxu0
      %1770 = vmatprep.mubr.f32.mxu0 0.0
      %1771 = vmatmul.mubr.f32.gmra.mrb[0].mxu0 %v1326
      %v1772 = vpop.f32.mrb[0].mxu0
      %v1773 = vadd.f32 %v1668, %v1772
      %v1774 = vpop.f32.mrb[0].mxu0
      %1775 = vmatprep.mubr.f32.mxu0 0.0
      %1776 = vmatmul.mubr.f32.gmra.mrb[0].mxu0 %v1329
      %v1777 = vpop.f32.mrb[0].mxu0
      %v1778 = vadd.f32 %v1673, %v1777
      %v1779 = vpop.f32.mrb[0].mxu0
      %1780 = vmatprep.mubr.f32.mxu0 0.0
      %1781 = vmatmul.mubr.f32.gmra.mrb[0].mxu0 %v1332
      %v1782 = vpop.f32.mrb[0].mxu0
      %v1783 = vadd.f32 %v1678, %v1782
      %v1784 = vpop.f32.mrb[0].mxu0
      %1785 = vdwg.mxu0
      %1786 = vxpose.xlu0.b32.start [1/16] %v1568, 128
      %1787 = vxpose.xlu0.b32.cont [2/16] %v1569, 128
      %1788 = vxpose.xlu0.b32.cont [3/16] 0.0, 128
      %1789 = vxpose.xlu0.b32.cont [4/16] 0.0, 128
      %1790 = vxpose.xlu0.b32.cont [5/16] 0.0, 128
      %1791 = vxpose.xlu0.b32.cont [6/16] 0.0, 128
      %1792 = vxpose.xlu0.b32.cont [7/16] 0.0, 128
      %1793 = vxpose.xlu0.b32.cont [8/16] 0.0, 128
      %1794 = vxpose.xlu0.b32.cont [9/16] 0.0, 128
      %1795 = vxpose.xlu0.b32.cont [10/16] 0.0, 128
      %1796 = vxpose.xlu0.b32.cont [11/16] 0.0, 128
      %1797 = vxpose.xlu0.b32.cont [12/16] 0.0, 128
      %1798 = vxpose.xlu0.b32.cont [13/16] 0.0, 128
      %1799 = vxpose.xlu0.b32.cont [14/16] 0.0, 128
      %1800 = vxpose.xlu0.b32.cont [15/16] 0.0, 128
      %1801 = vxpose.xlu0.b32.end [16/16] 0.0, 128
      %v1802 = vpop.trf.xlu0
      %v1803 = vpop.trf.xlu0
      %v1804 = vpop.trf.xlu0
      %v1805 = vpop.trf.xlu0
      %v1806 = vpop.trf.xlu0
      %v1807 = vpop.trf.xlu0
      %v1808 = vpop.trf.xlu0
      %v1809 = vpop.trf.xlu0
      %v1810 = vpop.trf.xlu0
      %v1811 = vpop.trf.xlu0
      %v1812 = vpop.trf.xlu0
      %v1813 = vpop.trf.xlu0
      %v1814 = vpop.trf.xlu0
      %v1815 = vpop.trf.xlu0
      %v1816 = vpop.trf.xlu0
      %v1817 = vpop.trf.xlu0
      %1818 = vxpose.xlu0.b32.start [1/16] %v1570, 128
      %1819 = vxpose.xlu0.b32.cont [2/16] %v1571, 128
      %1820 = vxpose.xlu0.b32.cont [3/16] 0.0, 128
      %1821 = vxpose.xlu0.b32.cont [4/16] 0.0, 128
      %1822 = vxpose.xlu0.b32.cont [5/16] 0.0, 128
      %1823 = vxpose.xlu0.b32.cont [6/16] 0.0, 128
      %1824 = vxpose.xlu0.b32.cont [7/16] 0.0, 128
      %1825 = vxpose.xlu0.b32.cont [8/16] 0.0, 128
      %1826 = vxpose.xlu0.b32.cont [9/16] 0.0, 128
      %1827 = vxpose.xlu0.b32.cont [10/16] 0.0, 128
      %1828 = vxpose.xlu0.b32.cont [11/16] 0.0, 128
      %1829 = vxpose.xlu0.b32.cont [12/16] 0.0, 128
      %1830 = vxpose.xlu0.b32.cont [13/16] 0.0, 128
      %1831 = vxpose.xlu0.b32.cont [14/16] 0.0, 128
      %1832 = vxpose.xlu0.b32.cont [15/16] 0.0, 128
      %1833 = vxpose.xlu0.b32.end [16/16] 0.0, 128
      %v1834 = vpop.trf.xlu0
      %v1835 = vpop.trf.xlu0
      %v1836 = vpop.trf.xlu0
      %v1837 = vpop.trf.xlu0
      %v1838 = vpop.trf.xlu0
      %v1839 = vpop.trf.xlu0
      %v1840 = vpop.trf.xlu0
      %v1841 = vpop.trf.xlu0
      %v1842 = vpop.trf.xlu0
      %v1843 = vpop.trf.xlu0
      %v1844 = vpop.trf.xlu0
      %v1845 = vpop.trf.xlu0
      %v1846 = vpop.trf.xlu0
      %v1847 = vpop.trf.xlu0
      %v1848 = vpop.trf.xlu0
      %v1849 = vpop.trf.xlu0
      %1850 = vxpose.xlu0.b32.start [1/16] %v1572, 128
      %1851 = vxpose.xlu0.b32.cont [2/16] %v1573, 128
      %1852 = vxpose.xlu0.b32.cont [3/16] 0.0, 128
      %1853 = vxpose.xlu0.b32.cont [4/16] 0.0, 128
      %1854 = vxpose.xlu0.b32.cont [5/16] 0.0, 128
      %1855 = vxpose.xlu0.b32.cont [6/16] 0.0, 128
      %1856 = vxpose.xlu0.b32.cont [7/16] 0.0, 128
      %1857 = vxpose.xlu0.b32.cont [8/16] 0.0, 128
      %1858 = vxpose.xlu0.b32.cont [9/16] 0.0, 128
      %1859 = vxpose.xlu0.b32.cont [10/16] 0.0, 128
      %1860 = vxpose.xlu0.b32.cont [11/16] 0.0, 128
      %1861 = vxpose.xlu0.b32.cont [12/16] 0.0, 128
      %1862 = vxpose.xlu0.b32.cont [13/16] 0.0, 128
      %1863 = vxpose.xlu0.b32.cont [14/16] 0.0, 128
      %1864 = vxpose.xlu0.b32.cont [15/16] 0.0, 128
      %1865 = vxpose.xlu0.b32.end [16/16] 0.0, 128
      %v1866 = vpop.trf.xlu0
      %v1867 = vpop.trf.xlu0
      %v1868 = vpop.trf.xlu0
      %v1869 = vpop.trf.xlu0
      %v1870 = vpop.trf.xlu0
      %v1871 = vpop.trf.xlu0
      %v1872 = vpop.trf.xlu0
      %v1873 = vpop.trf.xlu0
      %v1874 = vpop.trf.xlu0
      %v1875 = vpop.trf.xlu0
      %v1876 = vpop.trf.xlu0
      %v1877 = vpop.trf.xlu0
      %v1878 = vpop.trf.xlu0
      %v1879 = vpop.trf.xlu0
      %v1880 = vpop.trf.xlu0
      %v1881 = vpop.trf.xlu0
      %1882 = vxpose.xlu0.b32.start [1/16] %v1574, 128
      %1883 = vxpose.xlu0.b32.cont [2/16] %v1575, 128
      %1884 = vxpose.xlu0.b32.cont [3/16] 0.0, 128
      %1885 = vxpose.xlu0.b32.cont [4/16] 0.0, 128
      %1886 = vxpose.xlu0.b32.cont [5/16] 0.0, 128
      %1887 = vxpose.xlu0.b32.cont [6/16] 0.0, 128
      %1888 = vxpose.xlu0.b32.cont [7/16] 0.0, 128
      %1889 = vxpose.xlu0.b32.cont [8/16] 0.0, 128
      %1890 = vxpose.xlu0.b32.cont [9/16] 0.0, 128
      %1891 = vxpose.xlu0.b32.cont [10/16] 0.0, 128
      %1892 = vxpose.xlu0.b32.cont [11/16] 0.0, 128
      %1893 = vxpose.xlu0.b32.cont [12/16] 0.0, 128
      %1894 = vxpose.xlu0.b32.cont [13/16] 0.0, 128
      %1895 = vxpose.xlu0.b32.cont [14/16] 0.0, 128
      %1896 = vxpose.xlu0.b32.cont [15/16] 0.0, 128
      %1897 = vxpose.xlu0.b32.end [16/16] 0.0, 128
      %v1898 = vpop.trf.xlu0
      %v1899 = vpop.trf.xlu0
      %v1900 = vpop.trf.xlu0
      %v1901 = vpop.trf.xlu0
      %v1902 = vpop.trf.xlu0
      %v1903 = vpop.trf.xlu0
      %v1904 = vpop.trf.xlu0
      %v1905 = vpop.trf.xlu0
      %v1906 = vpop.trf.xlu0
      %v1907 = vpop.trf.xlu0
      %v1908 = vpop.trf.xlu0
      %v1909 = vpop.trf.xlu0
      %v1910 = vpop.trf.xlu0
      %v1911 = vpop.trf.xlu0
      %v1912 = vpop.trf.xlu0
      %v1913 = vpop.trf.xlu0
      %1914 = vxpose.xlu0.b32.start [1/16] %v1748, 128
      %1915 = vxpose.xlu0.b32.cont [2/16] %v1753, 128
      %1916 = vxpose.xlu0.b32.cont [3/16] 0.0, 128
      %1917 = vxpose.xlu0.b32.cont [4/16] 0.0, 128
      %1918 = vxpose.xlu0.b32.cont [5/16] 0.0, 128
      %1919 = vxpose.xlu0.b32.cont [6/16] 0.0, 128
      %1920 = vxpose.xlu0.b32.cont [7/16] 0.0, 128
      %1921 = vxpose.xlu0.b32.cont [8/16] 0.0, 128
      %1922 = vxpose.xlu0.b32.cont [9/16] 0.0, 128
      %1923 = vxpose.xlu0.b32.cont [10/16] 0.0, 128
      %1924 = vxpose.xlu0.b32.cont [11/16] 0.0, 128
      %1925 = vxpose.xlu0.b32.cont [12/16] 0.0, 128
      %1926 = vxpose.xlu0.b32.cont [13/16] 0.0, 128
      %1927 = vxpose.xlu0.b32.cont [14/16] 0.0, 128
      %1928 = vxpose.xlu0.b32.cont [15/16] 0.0, 128
      %1929 = vxpose.xlu0.b32.end [16/16] 0.0, 128
      %v1930 = vpop.trf.xlu0
      %v1931 = vpop.trf.xlu0
      %v1932 = vpop.trf.xlu0
      %v1933 = vpop.trf.xlu0
      %v1934 = vpop.trf.xlu0
      %v1935 = vpop.trf.xlu0
      %v1936 = vpop.trf.xlu0
      %v1937 = vpop.trf.xlu0
      %v1938 = vpop.trf.xlu0
      %v1939 = vpop.trf.xlu0
      %v1940 = vpop.trf.xlu0
      %v1941 = vpop.trf.xlu0
      %v1942 = vpop.trf.xlu0
      %v1943 = vpop.trf.xlu0
      %v1944 = vpop.trf.xlu0
      %v1945 = vpop.trf.xlu0
      %1946 = vxpose.xlu0.b32.start [1/16] %v1758, 128
      %1947 = vxpose.xlu0.b32.cont [2/16] %v1763, 128
      %1948 = vxpose.xlu0.b32.cont [3/16] 0.0, 128
      %1949 = vxpose.xlu0.b32.cont [4/16] 0.0, 128
      %1950 = vxpose.xlu0.b32.cont [5/16] 0.0, 128
      %1951 = vxpose.xlu0.b32.cont [6/16] 0.0, 128
      %1952 = vxpose.xlu0.b32.cont [7/16] 0.0, 128
      %1953 = vxpose.xlu0.b32.cont [8/16] 0.0, 128
      %1954 = vxpose.xlu0.b32.cont [9/16] 0.0, 128
      %1955 = vxpose.xlu0.b32.cont [10/16] 0.0, 128
      %1956 = vxpose.xlu0.b32.cont [11/16] 0.0, 128
      %1957 = vxpose.xlu0.b32.cont [12/16] 0.0, 128
      %1958 = vxpose.xlu0.b32.cont [13/16] 0.0, 128
      %1959 = vxpose.xlu0.b32.cont [14/16] 0.0, 128
      %1960 = vxpose.xlu0.b32.cont [15/16] 0.0, 128
      %1961 = vxpose.xlu0.b32.end [16/16] 0.0, 128
      %v1962 = vpop.trf.xlu0
      %v1963 = vpop.trf.xlu0
      %v1964 = vpop.trf.xlu0
      %v1965 = vpop.trf.xlu0
      %v1966 = vpop.trf.xlu0
      %v1967 = vpop.trf.xlu0
      %v1968 = vpop.trf.xlu0
      %v1969 = vpop.trf.xlu0
      %v1970 = vpop.trf.xlu0
      %v1971 = vpop.trf.xlu0
      %v1972 = vpop.trf.xlu0
      %v1973 = vpop.trf.xlu0
      %v1974 = vpop.trf.xlu0
      %v1975 = vpop.trf.xlu0
      %v1976 = vpop.trf.xlu0
      %v1977 = vpop.trf.xlu0
      %1978 = vxpose.xlu0.b32.start [1/16] %v1768, 128
      %1979 = vxpose.xlu0.b32.cont [2/16] %v1773, 128
      %1980 = vxpose.xlu0.b32.cont [3/16] 0.0, 128
      %1981 = vxpose.xlu0.b32.cont [4/16] 0.0, 128
      %1982 = vxpose.xlu0.b32.cont [5/16] 0.0, 128
      %1983 = vxpose.xlu0.b32.cont [6/16] 0.0, 128
      %1984 = vxpose.xlu0.b32.cont [7/16] 0.0, 128
      %1985 = vxpose.xlu0.b32.cont [8/16] 0.0, 128
      %1986 = vxpose.xlu0.b32.cont [9/16] 0.0, 128
      %1987 = vxpose.xlu0.b32.cont [10/16] 0.0, 128
      %1988 = vxpose.xlu0.b32.cont [11/16] 0.0, 128
      %1989 = vxpose.xlu0.b32.cont [12/16] 0.0, 128
      %1990 = vxpose.xlu0.b32.cont [13/16] 0.0, 128
      %1991 = vxpose.xlu0.b32.cont [14/16] 0.0, 128
      %1992 = vxpose.xlu0.b32.cont [15/16] 0.0, 128
      %1993 = vxpose.xlu0.b32.end [16/16] 0.0, 128
      %v1994 = vpop.trf.xlu0
      %v1995 = vpop.trf.xlu0
      %v1996 = vpop.trf.xlu0
      %v1997 = vpop.trf.xlu0
      %v1998 = vpop.trf.xlu0
      %v1999 = vpop.trf.xlu0
      %v2000 = vpop.trf.xlu0
      %v2001 = vpop.trf.xlu0
      %v2002 = vpop.trf.xlu0
      %v2003 = vpop.trf.xlu0
      %v2004 = vpop.trf.xlu0
      %v2005 = vpop.trf.xlu0
      %v2006 = vpop.trf.xlu0
      %v2007 = vpop.trf.xlu0
      %v2008 = vpop.trf.xlu0
      %v2009 = vpop.trf.xlu0
      %2010 = vxpose.xlu0.b32.start [1/16] %v1778, 128
      %2011 = vxpose.xlu0.b32.cont [2/16] %v1783, 128
      %2012 = vxpose.xlu0.b32.cont [3/16] 0.0, 128
      %2013 = vxpose.xlu0.b32.cont [4/16] 0.0, 128
      %2014 = vxpose.xlu0.b32.cont [5/16] 0.0, 128
      %2015 = vxpose.xlu0.b32.cont [6/16] 0.0, 128
      %2016 = vxpose.xlu0.b32.cont [7/16] 0.0, 128
      %2017 = vxpose.xlu0.b32.cont [8/16] 0.0, 128
      %2018 = vxpose.xlu0.b32.cont [9/16] 0.0, 128
      %2019 = vxpose.xlu0.b32.cont [10/16] 0.0, 128
      %2020 = vxpose.xlu0.b32.cont [11/16] 0.0, 128
      %2021 = vxpose.xlu0.b32.cont [12/16] 0.0, 128
      %2022 = vxpose.xlu0.b32.cont [13/16] 0.0, 128
      %2023 = vxpose.xlu0.b32.cont [14/16] 0.0, 128
      %2024 = vxpose.xlu0.b32.cont [15/16] 0.0, 128
      %2025 = vxpose.xlu0.b32.end [16/16] 0.0, 128
      %v2026 = vpop.trf.xlu0
      %v2027 = vpop.trf.xlu0
      %v2028 = vpop.trf.xlu0
      %v2029 = vpop.trf.xlu0
      %v2030 = vpop.trf.xlu0
      %v2031 = vpop.trf.xlu0
      %v2032 = vpop.trf.xlu0
      %v2033 = vpop.trf.xlu0
      %v2034 = vpop.trf.xlu0
      %v2035 = vpop.trf.xlu0
      %v2036 = vpop.trf.xlu0
      %v2037 = vpop.trf.xlu0
      %v2038 = vpop.trf.xlu0
      %v2039 = vpop.trf.xlu0
      %v2040 = vpop.trf.xlu0
      %v2041 = vpop.trf.xlu0
      %v2042 = vld [vmem:[%s4] sm:$0xff]
      %v2043 = vld [vmem:[%s4 + $0x8] sm:$0xff]
      %v2045 = vsel %vm265, %v1802, 0
      %v2048 = vsel %vm265, %v1834, 0
      %v2051 = vsel %vm265, %v1866, 0
      %v2054 = vsel %vm265, %v1898, 0
      %2056 = vmatprep.subr.mxu0 0.0
      %2057 = vmatpush1.msra.mxu0 %v2042
      %2058 = vmatprep.subr.mxu0 0.0
      %2059 = vmatpush1.msra.mxu0 %v2043
      %2060 = vmatprep.subr.mxu0 0.0
      %2061 = vmatpush1.msra.mxu0 0.0
      %2062 = vmatprep.subr.mxu0 0.0
      %2063 = vmatpush1.msra.mxu0 0.0
      %2064 = vmatprep.subr.mxu0 0.0
      %2065 = vmatpush1.msra.mxu0 0.0
      %2066 = vmatprep.subr.mxu0 0.0
      %2067 = vmatpush1.msra.mxu0 0.0
      %2068 = vmatprep.subr.mxu0 0.0
      %2069 = vmatpush1.msra.mxu0 0.0
      %2070 = vmatprep.subr.mxu0 0.0
      %2071 = vmatpush1.msra.mxu0 0.0
      %2072 = vmatprep.subr.mxu0 0.0
      %2073 = vmatpush1.msra.mxu0 0.0
      %2074 = vmatprep.subr.mxu0 0.0
      %2075 = vmatpush1.msra.mxu0 0.0
      %2076 = vmatprep.subr.mxu0 0.0
      %2077 = vmatpush1.msra.mxu0 0.0
      %2078 = vmatprep.subr.mxu0 0.0
      %2079 = vmatpush1.msra.mxu0 0.0
      %2080 = vmatprep.subr.mxu0 0.0
      %2081 = vmatpush1.msra.mxu0 0.0
      %2082 = vmatprep.subr.mxu0 0.0
      %2083 = vmatpush1.msra.mxu0 0.0
      %2084 = vmatprep.subr.mxu0 0.0
      %2085 = vmatpush1.msra.mxu0 0.0
      %2086 = vmatprep.subr.mxu0 0.0
      %2087 = vmatpush1.msra.mxu0 0.0
      %2088 = vmatprep.subr.mxu0 0.0
      %2089 = vmatpush1.msra.mxu0 0.0
      %2090 = vmatprep.subr.mxu0 0.0
      %2091 = vmatpush1.msra.mxu0 0.0
      %2092 = vmatprep.subr.mxu0 0.0
      %2093 = vmatpush1.msra.mxu0 0.0
      %2094 = vmatprep.subr.mxu0 0.0
      %2095 = vmatpush1.msra.mxu0 0.0
      %2096 = vmatprep.subr.mxu0 0.0
      %2097 = vmatpush1.msra.mxu0 0.0
      %2098 = vmatprep.subr.mxu0 0.0
      %2099 = vmatpush1.msra.mxu0 0.0
      %2100 = vmatprep.subr.mxu0 0.0
      %2101 = vmatpush1.msra.mxu0 0.0
      %2102 = vmatprep.subr.mxu0 0.0
      %2103 = vmatpush1.msra.mxu0 0.0
      %2104 = vmatprep.subr.mxu0 0.0
      %2105 = vmatpush1.msra.mxu0 0.0
      %2106 = vmatprep.subr.mxu0 0.0
      %2107 = vmatpush1.msra.mxu0 0.0
      %2108 = vmatprep.subr.mxu0 0.0
      %2109 = vmatpush1.msra.mxu0 0.0
      %2110 = vmatprep.subr.mxu0 0.0
      %2111 = vmatpush1.msra.mxu0 0.0
      %2112 = vmatprep.subr.mxu0 0.0
      %2113 = vmatpush1.msra.mxu0 0.0
      %2114 = vmatprep.subr.mxu0 0.0
      %2115 = vmatpush1.msra.mxu0 0.0
      %2116 = vmatprep.subr.mxu0 0.0
      %2117 = vmatpush1.msra.mxu0 0.0
      %2118 = vmatprep.subr.mxu0 0.0
      %2119 = vmatpush1.msra.mxu0 0.0
      %2120 = vmatprep.mubr.f32.mxu0 0.0
      %2121 = vmatmul.mubr.f32.gmra.mrb[0].mxu0 %v2045
      %v2122 = vpop.f32.mrb[0].mxu0
      %v2123 = vadd.f32 0.0, %v2122
      %v2124 = vpop.f32.mrb[0].mxu0
      %2125 = vmatprep.mubr.f32.mxu0 0.0
      %2126 = vmatmul.mubr.f32.gmra.mrb[0].mxu0 %v2048
      %v2127 = vpop.f32.mrb[0].mxu0
      %v2128 = vadd.f32 0.0, %v2127
      %v2129 = vpop.f32.mrb[0].mxu0
      %2130 = vmatprep.mubr.f32.mxu0 0.0
      %2131 = vmatmul.mubr.f32.gmra.mrb[0].mxu0 %v2051
      %v2132 = vpop.f32.mrb[0].mxu0
      %v2133 = vadd.f32 0.0, %v2132
      %v2134 = vpop.f32.mrb[0].mxu0
      %2135 = vmatprep.mubr.f32.mxu0 0.0
      %2136 = vmatmul.mubr.f32.gmra.mrb[0].mxu0 %v2054
      %v2137 = vpop.f32.mrb[0].mxu0
      %v2138 = vadd.f32 0.0, %v2137
      %v2139 = vpop.f32.mrb[0].mxu0
      %2140 = vdwg.mxu0
      %s2141 = scalar_lea.vmem %s4, 16
      %v2142 = vld [vmem:[%s2141] sm:$0xff]
      %v2143 = vld [vmem:[%s2141 + $0x8] sm:$0xff]
      %v2145 = vsel %vm265, %v1930, 0
      %v2148 = vsel %vm265, %v1962, 0
      %v2151 = vsel %vm265, %v1994, 0
      %v2154 = vsel %vm265, %v2026, 0
      %2156 = vmatprep.subr.mxu0 0.0
      %2157 = vmatpush1.msra.mxu0 %v2142
      %2158 = vmatprep.subr.mxu0 0.0
      %2159 = vmatpush1.msra.mxu0 %v2143
      %2160 = vmatprep.subr.mxu0 0.0
      %2161 = vmatpush1.msra.mxu0 0.0
      %2162 = vmatprep.subr.mxu0 0.0
      %2163 = vmatpush1.msra.mxu0 0.0
      %2164 = vmatprep.subr.mxu0 0.0
      %2165 = vmatpush1.msra.mxu0 0.0
      %2166 = vmatprep.subr.mxu0 0.0
      %2167 = vmatpush1.msra.mxu0 0.0
      %2168 = vmatprep.subr.mxu0 0.0
      %2169 = vmatpush1.msra.mxu0 0.0
      %2170 = vmatprep.subr.mxu0 0.0
      %2171 = vmatpush1.msra.mxu0 0.0
      %2172 = vmatprep.subr.mxu0 0.0
      %2173 = vmatpush1.msra.mxu0 0.0
      %2174 = vmatprep.subr.mxu0 0.0
      %2175 = vmatpush1.msra.mxu0 0.0
      %2176 = vmatprep.subr.mxu0 0.0
      %2177 = vmatpush1.msra.mxu0 0.0
      %2178 = vmatprep.subr.mxu0 0.0
      %2179 = vmatpush1.msra.mxu0 0.0
      %2180 = vmatprep.subr.mxu0 0.0
      %2181 = vmatpush1.msra.mxu0 0.0
      %2182 = vmatprep.subr.mxu0 0.0
      %2183 = vmatpush1.msra.mxu0 0.0
      %2184 = vmatprep.subr.mxu0 0.0
      %2185 = vmatpush1.msra.mxu0 0.0
      %2186 = vmatprep.subr.mxu0 0.0
      %2187 = vmatpush1.msra.mxu0 0.0
      %2188 = vmatprep.subr.mxu0 0.0
      %2189 = vmatpush1.msra.mxu0 0.0
      %2190 = vmatprep.subr.mxu0 0.0
      %2191 = vmatpush1.msra.mxu0 0.0
      %2192 = vmatprep.subr.mxu0 0.0
      %2193 = vmatpush1.msra.mxu0 0.0
      %2194 = vmatprep.subr.mxu0 0.0
      %2195 = vmatpush1.msra.mxu0 0.0
      %2196 = vmatprep.subr.mxu0 0.0
      %2197 = vmatpush1.msra.mxu0 0.0
      %2198 = vmatprep.subr.mxu0 0.0
      %2199 = vmatpush1.msra.mxu0 0.0
      %2200 = vmatprep.subr.mxu0 0.0
      %2201 = vmatpush1.msra.mxu0 0.0
      %2202 = vmatprep.subr.mxu0 0.0
      %2203 = vmatpush1.msra.mxu0 0.0
      %2204 = vmatprep.subr.mxu0 0.0
      %2205 = vmatpush1.msra.mxu0 0.0
      %2206 = vmatprep.subr.mxu0 0.0
      %2207 = vmatpush1.msra.mxu0 0.0
      %2208 = vmatprep.subr.mxu0 0.0
      %2209 = vmatpush1.msra.mxu0 0.0
      %2210 = vmatprep.subr.mxu0 0.0
      %2211 = vmatpush1.msra.mxu0 0.0
      %2212 = vmatprep.subr.mxu0 0.0
      %2213 = vmatpush1.msra.mxu0 0.0
      %2214 = vmatprep.subr.mxu0 0.0
      %2215 = vmatpush1.msra.mxu0 0.0
      %2216 = vmatprep.subr.mxu0 0.0
      %2217 = vmatpush1.msra.mxu0 0.0
      %2218 = vmatprep.subr.mxu0 0.0
      %2219 = vmatpush1.msra.mxu0 0.0
      %2220 = vmatprep.mubr.f32.mxu0 0.0
      %2221 = vmatmul.mubr.f32.gmra.mrb[0].mxu0 %v2145
      %v2222 = vpop.f32.mrb[0].mxu0
      %v2223 = vadd.f32 0.0, %v2222
      %v2224 = vpop.f32.mrb[0].mxu0
      %2225 = vmatprep.mubr.f32.mxu0 0.0
      %2226 = vmatmul.mubr.f32.gmra.mrb[0].mxu0 %v2148
      %v2227 = vpop.f32.mrb[0].mxu0
      %v2228 = vadd.f32 0.0, %v2227
      %v2229 = vpop.f32.mrb[0].mxu0
      %2230 = vmatprep.mubr.f32.mxu0 0.0
      %2231 = vmatmul.mubr.f32.gmra.mrb[0].mxu0 %v2151
      %v2232 = vpop.f32.mrb[0].mxu0
      %v2233 = vadd.f32 0.0, %v2232
      %v2234 = vpop.f32.mrb[0].mxu0
      %2235 = vmatprep.mubr.f32.mxu0 0.0
      %2236 = vmatmul.mubr.f32.gmra.mrb[0].mxu0 %v2154
      %v2237 = vpop.f32.mrb[0].mxu0
      %v2238 = vadd.f32 0.0, %v2237
      %v2239 = vpop.f32.mrb[0].mxu0
      %2240 = vdwg.mxu0
      %v2241 = vsub.f32 %v2123, %v2223
      %v2242 = vsub.f32 %v2128, %v2228
      %v2243 = vsub.f32 %v2133, %v2233
      %v2244 = vsub.f32 %v2138, %v2238
      %vm2245 = vcmask 31744
      %2246 = vst.msk [vmem:[%s253] sm:$0xff] %vm2245, %v2241
      %2247 = vst.msk [vmem:[%s253 + $0x8] sm:$0xff] %vm2245, %v2242
      %2248 = vst.msk [vmem:[%s253 + $0x10] sm:$0xff] %vm2245, %v2243
      %2249 = vst.msk [vmem:[%s253 + $0x18] sm:$0xff] %vm2245, %v2244
      %s2250 = smul.u32 4, %s17
      %p2251 = scmp.lt.s32.totalorder %s2250, 7
      %s2252 = scalar_select %p2251, %s2250, 7
      %s2253 = smul.addr %s2252, 8
      %s2254 = scalar_lea.vmem %s6, %s2253
      // Predicated region
      $region45: #{tpu_custom_call.1} parent=43 // pred_check
        %p2255 = pneg %p166
      $region46: #{tpu_custom_call.1} parent=43 // pred_check_branch
        %2257 = sbr.rel (%p2255) target = $region48
      $region47: #{tpu_custom_call.1} parent=43 // pred_region
        %s2258 = smul.u32 4, %s17
      $region48: #{tpu_custom_call.1} parent=43 // pred_fallthru
        _
    $region44: #{tpu_custom_call.1} parent=5 // pred_fallthru
      _
    %p2259 = scmp.le.s32.totalorder 2, %s12
    // Predicated region
    $region49: #{tpu_custom_call.1} parent=5 // pred_check
      %p2260 = pneg %p2259
    $region50: #{tpu_custom_call.1} parent=5 // pred_check_branch
      %2262 = sbr.rel (%p2260) target = $region52
    $region51: #{tpu_custom_call.1} parent=5 // pred_region
      %s2263 = ssub.s32 %s12, 2
      // Predicated region
      $region53: #{tpu_custom_call.1} parent=51 // pred_check
        %p2264 = pneg %p172
      $region54: #{tpu_custom_call.1} parent=51 // pred_check_branch
        %2266 = sbr.rel (%p2264) target = $region56
      $region55: #{tpu_custom_call.1} parent=51 // pred_region
        %s2267 = smul.u32 4, %s18
        %p2268 = scmp.lt.s32.totalorder %s2267, 7
        %s2269 = scalar_select %p2268, %s2267, 7
        %s2270 = smul.addr %s2269, 8
        %s2271 = scalar_lea.vmem %s6, %s2270
      $region56: #{tpu_custom_call.1} parent=51 // pred_fallthru
        _
    $region52: #{tpu_custom_call.1} parent=5 // pred_fallthru
      _
  $region6: #{tpu_custom_call.1} parent=0 // loop_footer
    %s16 = sadd.s32 1, %s12
  $region7: #{tpu_custom_call.1} parent=0 // loop_footer_branch
    %11 = sbr.rel target = $region3
  $region8: #{tpu_custom_call.1} parent=0 // loop_exit
    _

</llo_original>
